<compile_context>
chip_gen: v7x
topology: tpu7x:2x2x1
jax: 0.10.0
libtpu: 0.0.40
codegen_flags: <defaults>
</compile_context>

<pallas_src>
import math
import jax
import jax.numpy as jnp
from jax import lax
from jax.experimental import pallas as pl
from jax.experimental.pallas import tpu as pltpu


def gelu_linear_kernel(x_ref, w_ref, b_ref, o_ref):
    # grid = (k_tiles,): a single sequential ("arbitrary") K-reduction axis.
    # The output block index is constant across k, so o_ref stays resident in VMEM
    # and acts as the f32 accumulator; it is written back to HBM once at the end.
    k = pl.program_id(0)

    @pl.when(k == 0)
    def _init():
        # Fold the bias into the accumulator init (replaces zero-init + finalize add).
        o_ref[...] = jnp.broadcast_to(b_ref[...], o_ref.shape)

    x = x_ref[...]  # (M, tk) f32
    # Exact (erf-based) GELU, matching torch.nn.GELU(approximate='none'), in f32 on VPU.
    g = 0.5 * x * (1.0 + lax.erf(x * (1.0 / math.sqrt(2.0))))
    # bf16 MXU operands, f32 accumulate directly into the output block.
    o_ref[...] += jnp.dot(
        g.astype(w_ref.dtype), w_ref[...], preferred_element_type=jnp.float32
    )


def _default_block_k(cin):
    """Per-generation K tile: v5e is purely DMA-bound -> fewer/larger steps; else 512."""
    try:
        kind = jax.devices()[0].device_kind.lower()
    except Exception:
        kind = ""
    if ("v5 lite" in kind) or ("v5e" in kind) or ("v5litepod" in kind):
        bk = 768  # 2 K steps
    else:
        bk = 512  # 3 K steps (v6e / v7x)
    if cin % bk != 0:
        # Fallback: single K step. Correct, but disables K pipelining (kept explicit so a
        # future shape change does not silently lose the DMA/compute overlap).
        bk = cin
    return bk


def prepare_params(weight, bias, *, param_dtype=jnp.bfloat16):
    """One-time prep outside the hot path: (Cout, Cin) -> (Cin, Cout), cast weight to bf16."""
    w_t = jnp.asarray(weight).T.astype(param_dtype)              # (Cin, Cout)
    b2d = jnp.asarray(bias).reshape(1, -1).astype(jnp.float32)   # (1, Cout)
    return w_t, b2d


def gelu_linear(x_nhwc, w_t, b2d, *, block_k=None):
    """x_nhwc: (N,H,W,Cin) f32; w_t: (Cin,Cout) prepared weight; b2d: (1,Cout) f32."""
    N, H, W, Cin = x_nhwc.shape
    Cin_w, Cout = w_t.shape
    assert Cin == Cin_w
    M = N * H * W
    x2d = x_nhwc.reshape(M, Cin)

    tk = block_k if block_k is not None else _default_block_k(Cin)
    if Cin % tk != 0:
        tk = Cin
    k_tiles = Cin // tk

    out2d = pl.pallas_call(
        gelu_linear_kernel,
        out_shape=jax.ShapeDtypeStruct((M, Cout), x_nhwc.dtype),
        grid_spec=pltpu.PrefetchScalarGridSpec(
            num_scalar_prefetch=0,
            grid=(k_tiles,),
            in_specs=[
                pl.BlockSpec((M, tk), lambda k: (0, k)),      # x slab, streamed over K
                pl.BlockSpec((tk, Cout), lambda k: (k, 0)),   # weight slab (already (Cin,Cout))
                pl.BlockSpec((1, Cout), lambda k: (0, 0)),    # bias
            ],
            out_specs=pl.BlockSpec((M, Cout), lambda k: (0, 0)),  # resident f32 accumulator
        ),
        compiler_params=pltpu.CompilerParams(
            dimension_semantics=("arbitrary",),
        ),
    )(x2d, w_t, b2d)

    return out2d.reshape(N, H, W, Cout)


if __name__ == "__main__":
    key = jax.random.PRNGKey(0)
    k_x, k_w, k_b = jax.random.split(key, 3)

    # Shapes implied by the module's forward: x144 is (1, 14, 14, 1536), Linear(1536 -> 384).
    Cin, Cout = 1536, 384
    x = jax.random.normal(k_x, (1, 14, 14, Cin), dtype=jnp.float32)

    # PyTorch Linear default init: U(-1/sqrt(fan_in), 1/sqrt(fan_in))
    bound = 1.0 / math.sqrt(Cin)
    weight = jax.random.uniform(k_w, (Cout, Cin), jnp.float32, -bound, bound)
    bias = jax.random.uniform(k_b, (Cout,), jnp.float32, -bound, bound)

    # One-time parameter prep (transpose + bf16 cast) — not part of the per-call hot path.
    w_t, b2d = prepare_params(weight, bias)

    out = gelu_linear(x, w_t, b2d)
    out = jax.block_until_ready(out)

    # Sanity check against a plain-JAX f32 reference. Tolerance relaxed because the
    # matmul operands are bf16 (accumulation is f32).
    ref = 0.5 * x * (1.0 + lax.erf(x / math.sqrt(2.0)))
    ref = jnp.einsum("nhwc,oc->nhwo", ref, weight) + bias
    assert out.shape == (1, 14, 14, Cout)
    max_err = float(jnp.max(jnp.abs(out - ref)))
    assert jnp.allclose(out, ref, atol=2e-2, rtol=2e-2), max_err

    print("KERNEL_OK")
</pallas_src>

<mosaic_0001>
module attributes {stable_mosaic.version = 11 : i64} {
  func.func @gelu_linear_kernel(%arg0: i32, %arg1: memref<196x512xf32, #tpu.memory_space<vmem>>, %arg2: memref<512x384xbf16, #tpu.memory_space<vmem>>, %arg3: memref<1x384xf32, #tpu.memory_space<vmem>>, %arg4: memref<196x384xf32, #tpu.memory_space<vmem>>) attributes {dimension_semantics = [#tpu.dimension_semantics<arbitrary>], iteration_bounds = array<i64: 3>, scalar_prefetch = 0 : i64, scratch_operands = 0 : i64, tpu.core_type = #tpu.core_type<tc>, window_params = [{transform_indices = @transform_0, window_bounds = array<i64: 196, 512>}, {transform_indices = @transform_1, window_bounds = array<i64: 512, 384>}, {pipeline_mode = #tpu.pipeline_mode<synchronous>, transform_indices = @transform_2, window_bounds = array<i64: 1, 384>}, {pipeline_mode = #tpu.pipeline_mode<synchronous>, transform_indices = @transform_3, window_bounds = array<i64: 196, 384>}]} {
    %c0_i32 = arith.constant 0 : i32
    %0 = arith.cmpi eq, %arg0, %c0_i32 : i32
    %1 = arith.extui %0 : i1 to i32
    %c0_i32_0 = arith.constant 0 : i32
    %2 = arith.cmpi ne, %1, %c0_i32_0 : i32
    scf.if %2 {
      %c0_11 = arith.constant 0 : index
      %c0_12 = arith.constant 0 : index
      %18 = vector.load %arg3[%c0_11, %c0_12] : memref<1x384xf32, #tpu.memory_space<vmem>>, vector<1x384xf32>
      %19 = vector.shape_cast %18 : vector<1x384xf32> to vector<1x384xf32>
      %20 = vector.broadcast %19 : vector<1x384xf32> to vector<196x384xf32>
      %c0_13 = arith.constant 0 : index
      %c0_14 = arith.constant 0 : index
      %21 = vector.load %arg4[%c0_13, %c0_14] : memref<196x384xf32, #tpu.memory_space<vmem>>, vector<196x384xf32>
      tpu.vector_store %arg4[%c0_13, %c0_14], %20 {strides = array<i32>} : memref<196x384xf32, #tpu.memory_space<vmem>>, vector<196x384xf32>,
    } else {
    }
    %c0 = arith.constant 0 : index
    %c0_1 = arith.constant 0 : index
    %3 = vector.load %arg1[%c0, %c0_1] : memref<196x512xf32, #tpu.memory_space<vmem>>, vector<196x512xf32>
    %cst = arith.constant 5.000000e-01 : f32
    %4 = vector.broadcast %cst : f32 to vector<196x512xf32>
    %5 = arith.mulf %4, %3 : vector<196x512xf32>
    %cst_2 = arith.constant 0.707106769 : f32
    %6 = vector.broadcast %cst_2 : f32 to vector<196x512xf32>
    %7 = arith.mulf %3, %6 : vector<196x512xf32>
    %8 = math.erf %7 : vector<196x512xf32>
    %cst_3 = arith.constant 1.000000e+00 : f32
    %9 = vector.broadcast %cst_3 : f32 to vector<196x512xf32>
    %10 = arith.addf %9, %8 : vector<196x512xf32>
    %11 = arith.mulf %5, %10 : vector<196x512xf32>
    %c0_4 = arith.constant 0 : index
    %c0_5 = arith.constant 0 : index
    %12 = vector.load %arg4[%c0_4, %c0_5] : memref<196x384xf32, #tpu.memory_space<vmem>>, vector<196x384xf32>
    %13 = arith.truncf %11 : vector<196x512xf32> to vector<196x512xbf16>
    %c0_6 = arith.constant 0 : index
    %c0_7 = arith.constant 0 : index
    %14 = vector.load %arg2[%c0_6, %c0_7] : memref<512x384xbf16, #tpu.memory_space<vmem>>, vector<512x384xbf16>
    %cst_8 = arith.constant dense<0.000000e+00> : vector<196x384xf32>
    %15 = tpu.matmul %13, %14, %cst_8 {dimension_numbers = #tpu.dot_dimension_numbers<[1], [0], [0], [1], [0, 0, 1, 1], [], []>} : vector<196x512xbf16>, vector<512x384xbf16>, vector<196x384xf32> -> vector<196x384xf32>
    %16 = arith.addf %12, %15 : vector<196x384xf32>
    %c0_9 = arith.constant 0 : index
    %c0_10 = arith.constant 0 : index
    %17 = vector.load %arg4[%c0_9, %c0_10] : memref<196x384xf32, #tpu.memory_space<vmem>>, vector<196x384xf32>
    tpu.vector_store %arg4[%c0_9, %c0_10], %16 {strides = array<i32>} : memref<196x384xf32, #tpu.memory_space<vmem>>, vector<196x384xf32>,
    return
  }
  func.func @transform_0(%arg0: i32) -> (i32, i32) {
    %c0_i32 = arith.constant 0 : i32
    %c0_i32_0 = arith.constant 0 : i32
    return %c0_i32, %arg0 : i32, i32
  }
  func.func @transform_1(%arg0: i32) -> (i32, i32) {
    %c0_i32 = arith.constant 0 : i32
    %c0_i32_0 = arith.constant 0 : i32
    return %arg0, %c0_i32 : i32, i32
  }
  func.func @transform_2(%arg0: i32) -> (i32, i32) {
    %c0_i32 = arith.constant 0 : i32
    %c0_i32_0 = arith.constant 0 : i32
    %c0_i32_1 = arith.constant 0 : i32
    return %c0_i32, %c0_i32_0 : i32, i32
  }
  func.func @transform_3(%arg0: i32) -> (i32, i32) {
    %c0_i32 = arith.constant 0 : i32
    %c0_i32_0 = arith.constant 0 : i32
    %c0_i32_1 = arith.constant 0 : i32
    return %c0_i32, %c0_i32_0 : i32, i32
  }
}

</mosaic_0001>

<llo_original>
// kernel: tpu_custom_call.1
$region0: #{tpu_custom_call.1}
  #allocation0 [shape = 'u32[]', space=smem, size = 0x4, offset = 0x4, fixed_abs, tag = 'smem constant byte address 0x4 - core index']
  #allocation1 [shape = 'u32[144,128]{1,0:T(1,128)}', space=vmem, size = 0x12000, scoped, tag = 'internal scratch']
  %s0 = inlined_call_operand.hbm [shape: f32[196,1536], index: 0, kind: input, shape index: {}]
  %s1 = inlined_call_operand.hbm [shape: bf16[1536,384], index: 1, kind: input, shape index: {}]
  %s2 = inlined_call_operand.hbm [shape: f32[1,384], index: 2, kind: input, shape index: {}]
  %s3 = inlined_call_operand.hbm [shape: f32[196,384], index: 3, kind: output, shape index: {}]
  %s4 = sld [smem:[#allocation0]]
  $region61: #{tpu_custom_call.1} parent=0
    _
  %s6 = ssub.s32 1, %s4
  %s7 = scalar_select 0, %s6, %s4
  $region1: #{tpu_custom_call.1} parent=0
    #allocation2 [shape = 'u8[819200]{0}', space=vmem, size = 0xc8000, scoped, tag = 'input window, operand 0']
    #allocation3 [shape = 's32[2]{0}', space=sflag, size = 0x8, scoped, tag = 'scoped memory for tpu_custom_call.1']
    #allocation4 [shape = 's32[2]{0}', space=sflag, size = 0x8, scoped, tag = 'scoped memory for tpu_custom_call.1']
    #allocation5 [shape = 'u8[786432]{0}', space=vmem, size = 0xc0000, scoped, tag = 'input window, operand 1']
    #allocation6 [shape = 's32[2]{0}', space=sflag, size = 0x8, scoped, tag = 'scoped memory for tpu_custom_call.1']
    #allocation7 [shape = 'u8[1536]{0}', space=vmem, size = 0x800, scoped, tag = 'input window, operand 2, single buffered']
    #allocation8 [shape = 'u8[307200]{0}', space=vmem, size = 0x4b000, scoped, tag = 'output window, operand 0, single buffered']
    %8 = vsyncpa [#allocation3], 0
    %s9 = scalar_lea.sflag [#allocation3], 1
    %10 = vsyncpa %s9, 0
    %11 = vsyncpa [#allocation6], 0
    %s12 = scalar_lea.sflag [#allocation6], 1
    %13 = vsyncpa %s12, 0
    %14 = vsyncpa [#allocation4], 0
    loop: start=0, step=1, limit=5
    $region2: #{tpu_custom_call.1} parent=1 // loop_pre_header
      _
    $region3: #{tpu_custom_call.1} parent=1 // loop_header
      %s16 = sphi 0, %s20
      %p17 = scmp.ge.s32.totalorder %s16, 5
      %s26 = sphi 0, %s28
      %s29 = sphi 0, %s26
      %s30 = sphi 0, %s29
      %s46 = sphi 0, %s30
      %s52 = sphi 0, %s54
      %s55 = sphi 0, %s52
      %s56 = sphi 0, %s55
      %s72 = sphi 0, %s56
      %s76 = sphi 0, %s76
      %s78 = sphi 0, %s76
      %s79 = sphi 0, %s78
      %s93 = sphi 0, %s79
      %s97 = sphi 0, %s97
      %s99 = sphi 0, %s97
      %s100 = sphi 0, %s99
      %s114 = sphi 0, %s100
    $region4: #{tpu_custom_call.1} parent=1 // loop_header_branch
      %19 = sbr.rel (%p17) target = $region8
    $region5: #{tpu_custom_call.1} parent=1 // loop_body
      %s21 = ssub.s32 %s16, 1
      %s22 = ssub.s32 %s16, 2
      %s23 = sadd.s32 %s16, 1
      %s24 = ssub.s32 %s16, %s23
      %p25 = scmp.eq.s32.totalorder %s24, 0
      %s27 = sadd.s32 %s26, 1
      %s28 = scalar_select %p25, %s26, %s27
      %p31 = pneg %p25
      %p32 = scmp.eq.s32.totalorder %s16, 2
      %p33 = por %p31, %p32
      %p34 = scmp.ne.s32.totalorder %s26, %s29
      %p35 = scmp.eq.s32.totalorder %s16, 0
      %p36 = por %p34, %p35
      %p37 = scmp.ne.s32.totalorder %s26, %s29
      %p38 = scmp.eq.s32.totalorder %s21, 2
      %p39 = por %p37, %p38
      %p40 = scmp.ne.s32.totalorder %s29, %s30
      %p41 = scmp.eq.s32.totalorder %s21, 0
      %p42 = por %p40, %p41
      %p43 = scmp.ne.s32.totalorder %s29, %s30
      %p44 = scmp.eq.s32.totalorder %s22, 2
      %p45 = por %p43, %p44
      %p47 = scmp.ne.s32.totalorder %s30, %s46
      %p48 = scmp.eq.s32.totalorder %s22, 0
      %p49 = por %p47, %p48
      %s50 = ssub.s32 %s16, %s23
      %p51 = scmp.eq.s32.totalorder %s50, 0
      %s53 = sadd.s32 %s52, 1
      %s54 = scalar_select %p51, %s52, %s53
      %p57 = pneg %p51
      %p58 = scmp.eq.s32.totalorder %s16, 2
      %p59 = por %p57, %p58
      %p60 = scmp.ne.s32.totalorder %s52, %s55
      %p61 = scmp.eq.s32.totalorder %s16, 0
      %p62 = por %p60, %p61
      %p63 = scmp.ne.s32.totalorder %s52, %s55
      %p64 = scmp.eq.s32.totalorder %s21, 2
      %p65 = por %p63, %p64
      %p66 = scmp.ne.s32.totalorder %s55, %s56
      %p67 = scmp.eq.s32.totalorder %s21, 0
      %p68 = por %p66, %p67
      %p69 = scmp.ne.s32.totalorder %s55, %s56
      %p70 = scmp.eq.s32.totalorder %s22, 2
      %p71 = por %p69, %p70
      %p73 = scmp.ne.s32.totalorder %s56, %s72
      %p74 = scmp.eq.s32.totalorder %s22, 0
      %p75 = por %p73, %p74
      %s77 = sadd.s32 %s76, 1
      %p80 = scmp.eq.s32.totalorder %s16, 2
      %p81 = scmp.ne.s32.totalorder %s76, %s78
      %p82 = scmp.eq.s32.totalorder %s16, 0
      %p83 = por %p81, %p82
      %p84 = scmp.ne.s32.totalorder %s76, %s78
      %p85 = scmp.eq.s32.totalorder %s21, 2
      %p86 = por %p84, %p85
      %p87 = scmp.ne.s32.totalorder %s78, %s79
      %p88 = scmp.eq.s32.totalorder %s21, 0
      %p89 = por %p87, %p88
      %p90 = scmp.ne.s32.totalorder %s78, %s79
      %p91 = scmp.eq.s32.totalorder %s22, 2
      %p92 = por %p90, %p91
      %p94 = scmp.ne.s32.totalorder %s79, %s93
      %p95 = scmp.eq.s32.totalorder %s22, 0
      %p96 = por %p94, %p95
      %s98 = sadd.s32 %s97, 1
      %p101 = scmp.eq.s32.totalorder %s16, 2
      %p102 = scmp.ne.s32.totalorder %s97, %s99
      %p103 = scmp.eq.s32.totalorder %s16, 0
      %p104 = por %p102, %p103
      %p105 = scmp.ne.s32.totalorder %s97, %s99
      %p106 = scmp.eq.s32.totalorder %s21, 2
      %p107 = por %p105, %p106
      %p108 = scmp.ne.s32.totalorder %s99, %s100
      %p109 = scmp.eq.s32.totalorder %s21, 0
      %p110 = por %p108, %p109
      %p111 = scmp.ne.s32.totalorder %s99, %s100
      %p112 = scmp.eq.s32.totalorder %s22, 2
      %p113 = por %p111, %p112
      %p115 = scmp.ne.s32.totalorder %s100, %s114
      %p116 = scmp.eq.s32.totalorder %s22, 0
      %p117 = por %p115, %p116
      %p118 = scmp.le.s32.totalorder 1, %s16
      %p119 = scmp.lt.s32.totalorder %s16, 4
      %p120 = pnand %p118, %p119
      %p121 = pneg %p120
      // Predicated region
      $region9: #{tpu_custom_call.1} parent=5 // pred_check
        _
      $region10: #{tpu_custom_call.1} parent=5 // pred_check_branch
        %123 = sbr.rel (%p120) target = $region12
      $region11: #{tpu_custom_call.1} parent=5 // pred_region
        %s124 = ssub.s32 %s16, 1
        // Predicated region
        $region13: #{tpu_custom_call.1} parent=11 // pred_check
          %p125 = pneg %p89
        $region14: #{tpu_custom_call.1} parent=11 // pred_check_branch
          %127 = sbr.rel (%p125) target = $region16
        $region15: #{tpu_custom_call.1} parent=11 // pred_region
          %s129 = ssub.s32 48, 48
          %130 = vsyncadd [#allocation6], %s129
          %s132 = sshll.u32 [#allocation7], 4
          %s133 = int_to_ptr.vmem [resolvable:$true] %s132
          %135 = dma.hbm_to_vmem [thread:$0]  %s2, 48, %s133, [#allocation6]
        $region16: #{tpu_custom_call.1} parent=11 // pred_fallthru
          _
      $region12: #{tpu_custom_call.1} parent=5 // pred_fallthru
        _
      %p136 = scmp.lt.s32.totalorder %s16, 3
      // Predicated region
      $region17: #{tpu_custom_call.1} parent=5 // pred_check
        %p137 = pneg %p136
      $region18: #{tpu_custom_call.1} parent=5 // pred_check_branch
        %139 = sbr.rel (%p137) target = $region20
      $region19: #{tpu_custom_call.1} parent=5 // pred_region
        // Predicated region
        $region21: #{tpu_custom_call.1} parent=19 // pred_check
          %p140 = pneg %p36
        $region22: #{tpu_custom_call.1} parent=19 // pred_check_branch
          %142 = sbr.rel (%p140) target = $region24
        $region23: #{tpu_custom_call.1} parent=19 // pred_region
          %s143 = sand.u32 %s26, 1
          %s144 = scalar_lea.sflag [#allocation3], %s143
          %s145 = sand.u32 %s26, 1
          %s146 = smul.addr %s145, 800
          %s147 = scalar_lea.vmem [#allocation2], %s146
          %s148 = smul.u32 4, %s16
          %s150 = ssub.s32 12800, 12800
          %151 = vsyncadd %s144, %s150
          %s152 = smul.addr %s148, 128
          %s153 = scalar_lea.hbm %s0, %s152
          %s154 = sshll.u32 %s147, 4
          %s155 = int_to_ptr.vmem [resolvable:$true] %s154
          %160 = dma.hbm_to_vmem [thread:$0]  %s153, 12800, %s155, %s144, 1536, 512, 32
        $region24: #{tpu_custom_call.1} parent=19 // pred_fallthru
          _
        // Predicated region
        $region25: #{tpu_custom_call.1} parent=19 // pred_check
          %p161 = pneg %p62
        $region26: #{tpu_custom_call.1} parent=19 // pred_check_branch
          %163 = sbr.rel (%p161) target = $region28
        $region27: #{tpu_custom_call.1} parent=19 // pred_region
          %s164 = sand.u32 %s16, 1
          %s165 = scalar_lea.sflag [#allocation6], %s164
          %s166 = sand.u32 %s52, 1
          %s167 = smul.addr %s166, 768
          %s168 = scalar_lea.vmem [#allocation5], %s167
          %s169 = smul.u32 64, %s16
          %s171 = ssub.s32 12288, 12288
          %172 = vsyncadd %s165, %s171
          %s173 = smul.addr %s169, 3
          %s174 = smul.addr %s173, 64
          %s175 = scalar_lea.hbm %s1, %s174
          %s176 = sshll.u32 %s168, 4
          %s177 = int_to_ptr.vmem [resolvable:$true] %s176
          %182 = dma.hbm_to_vmem [thread:$0]  %s175, 12288, %s177, %s165, 192, 192, 12
        $region28: #{tpu_custom_call.1} parent=19 // pred_fallthru
          _
      $region20: #{tpu_custom_call.1} parent=5 // pred_fallthru
        _
      %p183 = scmp.le.s32.totalorder 1, %s16
      %p184 = scmp.lt.s32.totalorder %s16, 4
      %p185 = pnand %p183, %p184
      %p186 = pneg %p185
      // Predicated region
      $region29: #{tpu_custom_call.1} parent=5 // pred_check
        _
      $region30: #{tpu_custom_call.1} parent=5 // pred_check_branch
        %188 = sbr.rel (%p185) target = $region32
      $region31: #{tpu_custom_call.1} parent=5 // pred_region
        %s189 = ssub.s32 %s16, 1
        %s190 = sand.u32 %s29, 1
        %s191 = scalar_lea.sflag [#allocation3], %s190
        %s192 = sand.u32 %s29, 1
        %s193 = smul.addr %s192, 800
        %s194 = scalar_lea.vmem [#allocation2], %s193
        // Predicated region
        $region33: #{tpu_custom_call.1} parent=31 // pred_check
          %p195 = pneg %p42
        $region34: #{tpu_custom_call.1} parent=31 // pred_check_branch
          %197 = sbr.rel (%p195) target = $region36
        $region35: #{tpu_custom_call.1} parent=31 // pred_region
          %198 = dma.done %s191, 12800
        $region36: #{tpu_custom_call.1} parent=31 // pred_fallthru
          _
        %s199 = sand.u32 %s21, 1
        %s200 = scalar_lea.sflag [#allocation6], %s199
        %s201 = sand.u32 %s55, 1
        %s202 = smul.addr %s201, 768
        %s203 = scalar_lea.vmem [#allocation5], %s202
        // Predicated region
        $region37: #{tpu_custom_call.1} parent=31 // pred_check
          %p204 = pneg %p68
        $region38: #{tpu_custom_call.1} parent=31 // pred_check_branch
          %206 = sbr.rel (%p204) target = $region40
        $region39: #{tpu_custom_call.1} parent=31 // pred_region
          %207 = dma.done %s200, 12288
        $region40: #{tpu_custom_call.1} parent=31 // pred_fallthru
          _
        // Predicated region
        $region41: #{tpu_custom_call.1} parent=31 // pred_check
          %p208 = pneg %p89
        $region42: #{tpu_custom_call.1} parent=31 // pred_check_branch
          %210 = sbr.rel (%p208) target = $region44
        $region43: #{tpu_custom_call.1} parent=31 // pred_region
          %211 = dma.done [#allocation6], 48
        $region44: #{tpu_custom_call.1} parent=31 // pred_fallthru
          _
        %s212 = sand.u32 %s29, 1
        %s213 = scalar_lea.sflag [#allocation3], %s212
        %s214 = sand.u32 %s29, 1
        %s215 = smul.addr %s214, 800
        %s216 = scalar_lea.vmem [#allocation2], %s215
        %p217 = pneg %p42
        %p218 = pneg %p39
        %s219 = sand.u32 %s21, 1
        %s220 = scalar_lea.sflag [#allocation6], %s219
        %s221 = sand.u32 %s55, 1
        %s222 = smul.addr %s221, 768
        %s223 = scalar_lea.vmem [#allocation5], %s222
        %p224 = pneg %p68
        %p225 = pneg %p65
        %p226 = pneg %p89
        %p227 = pneg %p86
        %p228 = pneg %p110
        %p229 = pneg %p107
        %s230 = smul.u32 4, %s21
        %s231 = smul.u32 64, %s21
        %p233 = scmp.eq.s32.totalorder %s21, 0
        // Predicated region
        $region45: #{tpu_custom_call.1} parent=31 // pred_check
          %p234 = pneg %p233
        $region46: #{tpu_custom_call.1} parent=31 // pred_check_branch
          %236 = sbr.rel (%p234) target = $region48
        $region47: #{tpu_custom_call.1} parent=31 // pred_region
          %v237 = vld [vmem:[#allocation7] sm:$0x7]
          %v239 = vlaneseq
          %v240 = vshrl.u32 %v239, 7
          %v241 = vsub.s32 0, %v240
          %v242 = vrot.slane %v237, %v241
          %v243 = vlaneseq
          %v244 = vshrl.u32 %v243, 7
          %v245 = vsub.s32 1, %v244
          %v246 = vrot.slane %v237, %v245
          %v247 = vlaneseq
          %v248 = vshrl.u32 %v247, 7
          %v249 = vsub.s32 2, %v248
          %v250 = vrot.slane %v237, %v249
          %254 = vst [vmem:[#allocation8] sm:$0xff] %v242
          %255 = vst [vmem:[#allocation8 + $0x8] sm:$0xff] %v246
          %256 = vst [vmem:[#allocation8 + $0x10] sm:$0xff] %v250
          %257 = vst [vmem:[#allocation8 + $0x18] sm:$0xff] %v242
          %258 = vst [vmem:[#allocation8 + $0x20] sm:$0xff] %v246
          %259 = vst [vmem:[#allocation8 + $0x28] sm:$0xff] %v250
          %260 = vst [vmem:[#allocation8 + $0x30] sm:$0xff] %v242
          %261 = vst [vmem:[#allocation8 + $0x38] sm:$0xff] %v246
          %262 = vst [vmem:[#allocation8 + $0x40] sm:$0xff] %v250
          %263 = vst [vmem:[#allocation8 + $0x48] sm:$0xff] %v242
          %264 = vst [vmem:[#allocation8 + $0x50] sm:$0xff] %v246
          %265 = vst [vmem:[#allocation8 + $0x58] sm:$0xff] %v250
          %266 = vst [vmem:[#allocation8 + $0x60] sm:$0xff] %v242
          %267 = vst [vmem:[#allocation8 + $0x68] sm:$0xff] %v246
          %268 = vst [vmem:[#allocation8 + $0x70] sm:$0xff] %v250
          %269 = vst [vmem:[#allocation8 + $0x78] sm:$0xff] %v242
          %270 = vst [vmem:[#allocation8 + $0x80] sm:$0xff] %v246
          %271 = vst [vmem:[#allocation8 + $0x88] sm:$0xff] %v250
          %272 = vst [vmem:[#allocation8 + $0x90] sm:$0xff] %v242
          %273 = vst [vmem:[#allocation8 + $0x98] sm:$0xff] %v246
          %274 = vst [vmem:[#allocation8 + $0xa0] sm:$0xff] %v250
          %275 = vst [vmem:[#allocation8 + $0xa8] sm:$0xff] %v242
          %276 = vst [vmem:[#allocation8 + $0xb0] sm:$0xff] %v246
          %277 = vst [vmem:[#allocation8 + $0xb8] sm:$0xff] %v250
          %278 = vst [vmem:[#allocation8 + $0xc0] sm:$0xff] %v242
          %279 = vst [vmem:[#allocation8 + $0xc8] sm:$0xff] %v246
          %280 = vst [vmem:[#allocation8 + $0xd0] sm:$0xff] %v250
          %281 = vst [vmem:[#allocation8 + $0xd8] sm:$0xff] %v242
          %282 = vst [vmem:[#allocation8 + $0xe0] sm:$0xff] %v246
          %283 = vst [vmem:[#allocation8 + $0xe8] sm:$0xff] %v250
          %284 = vst [vmem:[#allocation8 + $0xf0] sm:$0xff] %v242
          %285 = vst [vmem:[#allocation8 + $0xf8] sm:$0xff] %v246
          %286 = vst [vmem:[#allocation8 + $0x100] sm:$0xff] %v250
          %287 = vst [vmem:[#allocation8 + $0x108] sm:$0xff] %v242
          %288 = vst [vmem:[#allocation8 + $0x110] sm:$0xff] %v246
          %289 = vst [vmem:[#allocation8 + $0x118] sm:$0xff] %v250
          %290 = vst [vmem:[#allocation8 + $0x120] sm:$0xff] %v242
          %291 = vst [vmem:[#allocation8 + $0x128] sm:$0xff] %v246
          %292 = vst [vmem:[#allocation8 + $0x130] sm:$0xff] %v250
          %293 = vst [vmem:[#allocation8 + $0x138] sm:$0xff] %v242
          %294 = vst [vmem:[#allocation8 + $0x140] sm:$0xff] %v246
          %295 = vst [vmem:[#allocation8 + $0x148] sm:$0xff] %v250
          %296 = vst [vmem:[#allocation8 + $0x150] sm:$0xff] %v242
          %297 = vst [vmem:[#allocation8 + $0x158] sm:$0xff] %v246
          %298 = vst [vmem:[#allocation8 + $0x160] sm:$0xff] %v250
          %299 = vst [vmem:[#allocation8 + $0x168] sm:$0xff] %v242
          %300 = vst [vmem:[#allocation8 + $0x170] sm:$0xff] %v246
          %301 = vst [vmem:[#allocation8 + $0x178] sm:$0xff] %v250
          %302 = vst [vmem:[#allocation8 + $0x180] sm:$0xff] %v242
          %303 = vst [vmem:[#allocation8 + $0x188] sm:$0xff] %v246
          %304 = vst [vmem:[#allocation8 + $0x190] sm:$0xff] %v250
          %305 = vst [vmem:[#allocation8 + $0x198] sm:$0xff] %v242
          %306 = vst [vmem:[#allocation8 + $0x1a0] sm:$0xff] %v246
          %307 = vst [vmem:[#allocation8 + $0x1a8] sm:$0xff] %v250
          %308 = vst [vmem:[#allocation8 + $0x1b0] sm:$0xff] %v242
          %309 = vst [vmem:[#allocation8 + $0x1b8] sm:$0xff] %v246
          %310 = vst [vmem:[#allocation8 + $0x1c0] sm:$0xff] %v250
          %311 = vst [vmem:[#allocation8 + $0x1c8] sm:$0xff] %v242
          %312 = vst [vmem:[#allocation8 + $0x1d0] sm:$0xff] %v246
          %313 = vst [vmem:[#allocation8 + $0x1d8] sm:$0xff] %v250
          %314 = vst [vmem:[#allocation8 + $0x1e0] sm:$0xff] %v242
          %315 = vst [vmem:[#allocation8 + $0x1e8] sm:$0xff] %v246
          %316 = vst [vmem:[#allocation8 + $0x1f0] sm:$0xff] %v250
          %317 = vst [vmem:[#allocation8 + $0x1f8] sm:$0xff] %v242
          %318 = vst [vmem:[#allocation8 + $0x200] sm:$0xff] %v246
          %319 = vst [vmem:[#allocation8 + $0x208] sm:$0xff] %v250
          %320 = vst [vmem:[#allocation8 + $0x210] sm:$0xff] %v242
          %321 = vst [vmem:[#allocation8 + $0x218] sm:$0xff] %v246
          %322 = vst [vmem:[#allocation8 + $0x220] sm:$0xff] %v250
          %323 = vst [vmem:[#allocation8 + $0x228] sm:$0xff] %v242
          %324 = vst [vmem:[#allocation8 + $0x230] sm:$0xff] %v246
          %325 = vst [vmem:[#allocation8 + $0x238] sm:$0xff] %v250
          %326 = vst [vmem:[#allocation8 + $0x240] sm:$0xf] %v242
          %327 = vst [vmem:[#allocation8 + $0x248] sm:$0xf] %v246
          %328 = vst [vmem:[#allocation8 + $0x250] sm:$0xf] %v250
        $region48: #{tpu_custom_call.1} parent=31 // pred_fallthru
          _
        %v329 = vld [vmem:[%s194] sm:$0xff]
        %v330 = vld [vmem:[%s194 + $0x8] sm:$0xff]
        %v331 = vld [vmem:[%s194 + $0x10] sm:$0xff]
        %v332 = vld [vmem:[%s194 + $0x18] sm:$0xff]
        %v333 = vld [vmem:[%s194 + $0x20] sm:$0xff]
        %v334 = vld [vmem:[%s194 + $0x28] sm:$0xff]
        %v335 = vld [vmem:[%s194 + $0x30] sm:$0xff]
        %v336 = vld [vmem:[%s194 + $0x38] sm:$0xff]
        %v337 = vld [vmem:[%s194 + $0x40] sm:$0xff]
        %v338 = vld [vmem:[%s194 + $0x48] sm:$0xff]
        %v339 = vld [vmem:[%s194 + $0x50] sm:$0xff]
        %v340 = vld [vmem:[%s194 + $0x58] sm:$0xff]
        %v341 = vld [vmem:[%s194 + $0x60] sm:$0xff]
        %v342 = vld [vmem:[%s194 + $0x68] sm:$0xff]
        %v343 = vld [vmem:[%s194 + $0x70] sm:$0xff]
        %v344 = vld [vmem:[%s194 + $0x78] sm:$0xff]
        %v345 = vld [vmem:[%s194 + $0x80] sm:$0xff]
        %v346 = vld [vmem:[%s194 + $0x88] sm:$0xff]
        %v347 = vld [vmem:[%s194 + $0x90] sm:$0xff]
        %v348 = vld [vmem:[%s194 + $0x98] sm:$0xff]
        %v349 = vld [vmem:[%s194 + $0xa0] sm:$0xff]
        %v350 = vld [vmem:[%s194 + $0xa8] sm:$0xff]
        %v351 = vld [vmem:[%s194 + $0xb0] sm:$0xff]
        %v352 = vld [vmem:[%s194 + $0xb8] sm:$0xff]
        %v353 = vld [vmem:[%s194 + $0xc0] sm:$0xff]
        %v354 = vld [vmem:[%s194 + $0xc8] sm:$0xff]
        %v355 = vld [vmem:[%s194 + $0xd0] sm:$0xff]
        %v356 = vld [vmem:[%s194 + $0xd8] sm:$0xff]
        %v357 = vld [vmem:[%s194 + $0xe0] sm:$0xff]
        %v358 = vld [vmem:[%s194 + $0xe8] sm:$0xff]
        %v359 = vld [vmem:[%s194 + $0xf0] sm:$0xff]
        %v360 = vld [vmem:[%s194 + $0xf8] sm:$0xff]
        %v361 = vld [vmem:[%s194 + $0x100] sm:$0xff]
        %v362 = vld [vmem:[%s194 + $0x108] sm:$0xff]
        %v363 = vld [vmem:[%s194 + $0x110] sm:$0xff]
        %v364 = vld [vmem:[%s194 + $0x118] sm:$0xff]
        %v365 = vld [vmem:[%s194 + $0x120] sm:$0xff]
        %v366 = vld [vmem:[%s194 + $0x128] sm:$0xff]
        %v367 = vld [vmem:[%s194 + $0x130] sm:$0xff]
        %v368 = vld [vmem:[%s194 + $0x138] sm:$0xff]
        %v369 = vld [vmem:[%s194 + $0x140] sm:$0xff]
        %v370 = vld [vmem:[%s194 + $0x148] sm:$0xff]
        %v371 = vld [vmem:[%s194 + $0x150] sm:$0xff]
        %v372 = vld [vmem:[%s194 + $0x158] sm:$0xff]
        %v373 = vld [vmem:[%s194 + $0x160] sm:$0xff]
        %v374 = vld [vmem:[%s194 + $0x168] sm:$0xff]
        %v375 = vld [vmem:[%s194 + $0x170] sm:$0xff]
        %v376 = vld [vmem:[%s194 + $0x178] sm:$0xff]
        %v377 = vld [vmem:[%s194 + $0x180] sm:$0xff]
        %v378 = vld [vmem:[%s194 + $0x188] sm:$0xff]
        %v379 = vld [vmem:[%s194 + $0x190] sm:$0xff]
        %v380 = vld [vmem:[%s194 + $0x198] sm:$0xff]
        %v381 = vld [vmem:[%s194 + $0x1a0] sm:$0xff]
        %v382 = vld [vmem:[%s194 + $0x1a8] sm:$0xff]
        %v383 = vld [vmem:[%s194 + $0x1b0] sm:$0xff]
        %v384 = vld [vmem:[%s194 + $0x1b8] sm:$0xff]
        %v385 = vld [vmem:[%s194 + $0x1c0] sm:$0xff]
        %v386 = vld [vmem:[%s194 + $0x1c8] sm:$0xff]
        %v387 = vld [vmem:[%s194 + $0x1d0] sm:$0xff]
        %v388 = vld [vmem:[%s194 + $0x1d8] sm:$0xff]
        %v389 = vld [vmem:[%s194 + $0x1e0] sm:$0xff]
        %v390 = vld [vmem:[%s194 + $0x1e8] sm:$0xff]
        %v391 = vld [vmem:[%s194 + $0x1f0] sm:$0xff]
        %v392 = vld [vmem:[%s194 + $0x1f8] sm:$0xff]
        %v393 = vld [vmem:[%s194 + $0x200] sm:$0xff]
        %v394 = vld [vmem:[%s194 + $0x208] sm:$0xff]
        %v395 = vld [vmem:[%s194 + $0x210] sm:$0xff]
        %v396 = vld [vmem:[%s194 + $0x218] sm:$0xff]
        %v397 = vld [vmem:[%s194 + $0x220] sm:$0xff]
        %v398 = vld [vmem:[%s194 + $0x228] sm:$0xff]
        %v399 = vld [vmem:[%s194 + $0x230] sm:$0xff]
        %v400 = vld [vmem:[%s194 + $0x238] sm:$0xff]
        %v401 = vld [vmem:[%s194 + $0x240] sm:$0xff]
        %v402 = vld [vmem:[%s194 + $0x248] sm:$0xff]
        %v403 = vld [vmem:[%s194 + $0x250] sm:$0xff]
        %v404 = vld [vmem:[%s194 + $0x258] sm:$0xff]
        %v405 = vld [vmem:[%s194 + $0x260] sm:$0xff]
        %v406 = vld [vmem:[%s194 + $0x268] sm:$0xff]
        %v407 = vld [vmem:[%s194 + $0x270] sm:$0xff]
        %v408 = vld [vmem:[%s194 + $0x278] sm:$0xff]
        %v409 = vld [vmem:[%s194 + $0x280] sm:$0xff]
        %v410 = vld [vmem:[%s194 + $0x288] sm:$0xff]
        %v411 = vld [vmem:[%s194 + $0x290] sm:$0xff]
        %v412 = vld [vmem:[%s194 + $0x298] sm:$0xff]
        %v413 = vld [vmem:[%s194 + $0x2a0] sm:$0xff]
        %v414 = vld [vmem:[%s194 + $0x2a8] sm:$0xff]
        %v415 = vld [vmem:[%s194 + $0x2b0] sm:$0xff]
        %v416 = vld [vmem:[%s194 + $0x2b8] sm:$0xff]
        %v417 = vld [vmem:[%s194 + $0x2c0] sm:$0xff]
        %v418 = vld [vmem:[%s194 + $0x2c8] sm:$0xff]
        %v419 = vld [vmem:[%s194 + $0x2d0] sm:$0xff]
        %v420 = vld [vmem:[%s194 + $0x2d8] sm:$0xff]
        %v421 = vld [vmem:[%s194 + $0x2e0] sm:$0xff]
        %v422 = vld [vmem:[%s194 + $0x2e8] sm:$0xff]
        %v423 = vld [vmem:[%s194 + $0x2f0] sm:$0xff]
        %v424 = vld [vmem:[%s194 + $0x2f8] sm:$0xff]
        %v425 = vld [vmem:[%s194 + $0x300] sm:$0xf]
        %v426 = vld [vmem:[%s194 + $0x308] sm:$0xf]
        %v427 = vld [vmem:[%s194 + $0x310] sm:$0xf]
        %v428 = vld [vmem:[%s194 + $0x318] sm:$0xf]
        %v429 = vmul.f32 %v329, 0.5
        %v430 = vmul.f32 %v330, 0.5
        %v431 = vmul.f32 %v331, 0.5
        %v432 = vmul.f32 %v332, 0.5
        %v433 = vmul.f32 %v333, 0.5
        %v434 = vmul.f32 %v334, 0.5
        %v435 = vmul.f32 %v335, 0.5
        %v436 = vmul.f32 %v336, 0.5
        %v437 = vmul.f32 %v337, 0.5
        %v438 = vmul.f32 %v338, 0.5
        %v439 = vmul.f32 %v339, 0.5
        %v440 = vmul.f32 %v340, 0.5
        %v441 = vmul.f32 %v341, 0.5
        %v442 = vmul.f32 %v342, 0.5
        %v443 = vmul.f32 %v343, 0.5
        %v444 = vmul.f32 %v344, 0.5
        %v445 = vmul.f32 %v345, 0.5
        %v446 = vmul.f32 %v346, 0.5
        %v447 = vmul.f32 %v347, 0.5
        %v448 = vmul.f32 %v348, 0.5
        %v449 = vmul.f32 %v349, 0.5
        %v450 = vmul.f32 %v350, 0.5
        %v451 = vmul.f32 %v351, 0.5
        %v452 = vmul.f32 %v352, 0.5
        %v453 = vmul.f32 %v353, 0.5
        %v454 = vmul.f32 %v354, 0.5
        %v455 = vmul.f32 %v355, 0.5
        %v456 = vmul.f32 %v356, 0.5
        %v457 = vmul.f32 %v357, 0.5
        %v458 = vmul.f32 %v358, 0.5
        %v459 = vmul.f32 %v359, 0.5
        %v460 = vmul.f32 %v360, 0.5
        %v461 = vmul.f32 %v361, 0.5
        %v462 = vmul.f32 %v362, 0.5
        %v463 = vmul.f32 %v363, 0.5
        %v464 = vmul.f32 %v364, 0.5
        %v465 = vmul.f32 %v365, 0.5
        %v466 = vmul.f32 %v366, 0.5
        %v467 = vmul.f32 %v367, 0.5
        %v468 = vmul.f32 %v368, 0.5
        %v469 = vmul.f32 %v369, 0.5
        %v470 = vmul.f32 %v370, 0.5
        %v471 = vmul.f32 %v371, 0.5
        %v472 = vmul.f32 %v372, 0.5
        %v473 = vmul.f32 %v373, 0.5
        %v474 = vmul.f32 %v374, 0.5
        %v475 = vmul.f32 %v375, 0.5
        %v476 = vmul.f32 %v376, 0.5
        %v477 = vmul.f32 %v377, 0.5
        %v478 = vmul.f32 %v378, 0.5
        %v479 = vmul.f32 %v379, 0.5
        %v480 = vmul.f32 %v380, 0.5
        %v481 = vmul.f32 %v381, 0.5
        %v482 = vmul.f32 %v382, 0.5
        %v483 = vmul.f32 %v383, 0.5
        %v484 = vmul.f32 %v384, 0.5
        %v485 = vmul.f32 %v385, 0.5
        %v486 = vmul.f32 %v386, 0.5
        %v487 = vmul.f32 %v387, 0.5
        %v488 = vmul.f32 %v388, 0.5
        %v489 = vmul.f32 %v389, 0.5
        %v490 = vmul.f32 %v390, 0.5
        %v491 = vmul.f32 %v391, 0.5
        %v492 = vmul.f32 %v392, 0.5
        %v493 = vmul.f32 %v393, 0.5
        %v494 = vmul.f32 %v394, 0.5
        %v495 = vmul.f32 %v395, 0.5
        %v496 = vmul.f32 %v396, 0.5
        %v497 = vmul.f32 %v397, 0.5
        %v498 = vmul.f32 %v398, 0.5
        %v499 = vmul.f32 %v399, 0.5
        %v500 = vmul.f32 %v400, 0.5
        %v501 = vmul.f32 %v401, 0.5
        %v502 = vmul.f32 %v402, 0.5
        %v503 = vmul.f32 %v403, 0.5
        %v504 = vmul.f32 %v404, 0.5
        %v505 = vmul.f32 %v405, 0.5
        %v506 = vmul.f32 %v406, 0.5
        %v507 = vmul.f32 %v407, 0.5
        %v508 = vmul.f32 %v408, 0.5
        %v509 = vmul.f32 %v409, 0.5
        %v510 = vmul.f32 %v410, 0.5
        %v511 = vmul.f32 %v411, 0.5
        %v512 = vmul.f32 %v412, 0.5
        %v513 = vmul.f32 %v413, 0.5
        %v514 = vmul.f32 %v414, 0.5
        %v515 = vmul.f32 %v415, 0.5
        %v516 = vmul.f32 %v416, 0.5
        %v517 = vmul.f32 %v417, 0.5
        %v518 = vmul.f32 %v418, 0.5
        %v519 = vmul.f32 %v419, 0.5
        %v520 = vmul.f32 %v420, 0.5
        %v521 = vmul.f32 %v421, 0.5
        %v522 = vmul.f32 %v422, 0.5
        %v523 = vmul.f32 %v423, 0.5
        %v524 = vmul.f32 %v424, 0.5
        %v525 = vmul.f32 %v425, 0.5
        %v526 = vmul.f32 %v426, 0.5
        %v527 = vmul.f32 %v427, 0.5
        %v528 = vmul.f32 %v428, 0.5
        %v529 = vmul.f32 %v329, 0.70710677
        %v530 = vmul.f32 %v330, 0.70710677
        %v531 = vmul.f32 %v331, 0.70710677
        %v532 = vmul.f32 %v332, 0.70710677
        %v533 = vmul.f32 %v333, 0.70710677
        %v534 = vmul.f32 %v334, 0.70710677
        %v535 = vmul.f32 %v335, 0.70710677
        %v536 = vmul.f32 %v336, 0.70710677
        %v537 = vmul.f32 %v337, 0.70710677
        %v538 = vmul.f32 %v338, 0.70710677
        %v539 = vmul.f32 %v339, 0.70710677
        %v540 = vmul.f32 %v340, 0.70710677
        %v541 = vmul.f32 %v341, 0.70710677
        %v542 = vmul.f32 %v342, 0.70710677
        %v543 = vmul.f32 %v343, 0.70710677
        %v544 = vmul.f32 %v344, 0.70710677
        %v545 = vmul.f32 %v345, 0.70710677
        %v546 = vmul.f32 %v346, 0.70710677
        %v547 = vmul.f32 %v347, 0.70710677
        %v548 = vmul.f32 %v348, 0.70710677
        %v549 = vmul.f32 %v349, 0.70710677
        %v550 = vmul.f32 %v350, 0.70710677
        %v551 = vmul.f32 %v351, 0.70710677
        %v552 = vmul.f32 %v352, 0.70710677
        %v553 = vmul.f32 %v353, 0.70710677
        %v554 = vmul.f32 %v354, 0.70710677
        %v555 = vmul.f32 %v355, 0.70710677
        %v556 = vmul.f32 %v356, 0.70710677
        %v557 = vmul.f32 %v357, 0.70710677
        %v558 = vmul.f32 %v358, 0.70710677
        %v559 = vmul.f32 %v359, 0.70710677
        %v560 = vmul.f32 %v360, 0.70710677
        %v561 = vmul.f32 %v361, 0.70710677
        %v562 = vmul.f32 %v362, 0.70710677
        %v563 = vmul.f32 %v363, 0.70710677
        %v564 = vmul.f32 %v364, 0.70710677
        %v565 = vmul.f32 %v365, 0.70710677
        %v566 = vmul.f32 %v366, 0.70710677
        %v567 = vmul.f32 %v367, 0.70710677
        %v568 = vmul.f32 %v368, 0.70710677
        %v569 = vmul.f32 %v369, 0.70710677
        %v570 = vmul.f32 %v370, 0.70710677
        %v571 = vmul.f32 %v371, 0.70710677
        %v572 = vmul.f32 %v372, 0.70710677
        %v573 = vmul.f32 %v373, 0.70710677
        %v574 = vmul.f32 %v374, 0.70710677
        %v575 = vmul.f32 %v375, 0.70710677
        %v576 = vmul.f32 %v376, 0.70710677
        %v577 = vmul.f32 %v377, 0.70710677
        %v578 = vmul.f32 %v378, 0.70710677
        %v579 = vmul.f32 %v379, 0.70710677
        %v580 = vmul.f32 %v380, 0.70710677
        %v581 = vmul.f32 %v381, 0.70710677
        %v582 = vmul.f32 %v382, 0.70710677
        %v583 = vmul.f32 %v383, 0.70710677
        %v584 = vmul.f32 %v384, 0.70710677
        %v585 = vmul.f32 %v385, 0.70710677
        %v586 = vmul.f32 %v386, 0.70710677
        %v587 = vmul.f32 %v387, 0.70710677
        %v588 = vmul.f32 %v388, 0.70710677
        %v589 = vmul.f32 %v389, 0.70710677
        %v590 = vmul.f32 %v390, 0.70710677
        %v591 = vmul.f32 %v391, 0.70710677
        %v592 = vmul.f32 %v392, 0.70710677
        %v593 = vmul.f32 %v393, 0.70710677
        %v594 = vmul.f32 %v394, 0.70710677
        %v595 = vmul.f32 %v395, 0.70710677
        %v596 = vmul.f32 %v396, 0.70710677
        %v597 = vmul.f32 %v397, 0.70710677
        %v598 = vmul.f32 %v398, 0.70710677
        %v599 = vmul.f32 %v399, 0.70710677
        %v600 = vmul.f32 %v400, 0.70710677
        %v601 = vmul.f32 %v401, 0.70710677
        %v602 = vmul.f32 %v402, 0.70710677
        %v603 = vmul.f32 %v403, 0.70710677
        %v604 = vmul.f32 %v404, 0.70710677
        %v605 = vmul.f32 %v405, 0.70710677
        %v606 = vmul.f32 %v406, 0.70710677
        %v607 = vmul.f32 %v407, 0.70710677
        %v608 = vmul.f32 %v408, 0.70710677
        %v609 = vmul.f32 %v409, 0.70710677
        %v610 = vmul.f32 %v410, 0.70710677
        %v611 = vmul.f32 %v411, 0.70710677
        %v612 = vmul.f32 %v412, 0.70710677
        %v613 = vmul.f32 %v413, 0.70710677
        %v614 = vmul.f32 %v414, 0.70710677
        %v615 = vmul.f32 %v415, 0.70710677
        %v616 = vmul.f32 %v416, 0.70710677
        %v617 = vmul.f32 %v417, 0.70710677
        %v618 = vmul.f32 %v418, 0.70710677
        %v619 = vmul.f32 %v419, 0.70710677
        %v620 = vmul.f32 %v420, 0.70710677
        %v621 = vmul.f32 %v421, 0.70710677
        %v622 = vmul.f32 %v422, 0.70710677
        %v623 = vmul.f32 %v423, 0.70710677
        %v624 = vmul.f32 %v424, 0.70710677
        %v625 = vmul.f32 %v425, 0.70710677
        %v626 = vmul.f32 %v426, 0.70710677
        %v627 = vmul.f32 %v427, 0.70710677
        %v628 = vmul.f32 %v428, 0.70710677
        %v629 = verf.f32.pop %v529
        %v630 = verf.f32.pop %v530
        %v631 = verf.f32.pop %v531
        %v632 = verf.f32.pop %v532
        %v633 = verf.f32.pop %v533
        %v634 = verf.f32.pop %v534
        %v635 = verf.f32.pop %v535
        %v636 = verf.f32.pop %v536
        %v637 = verf.f32.pop %v537
        %v638 = verf.f32.pop %v538
        %v639 = verf.f32.pop %v539
        %v640 = verf.f32.pop %v540
        %v641 = verf.f32.pop %v541
        %v642 = verf.f32.pop %v542
        %v643 = verf.f32.pop %v543
        %v644 = verf.f32.pop %v544
        %v645 = verf.f32.pop %v545
        %v646 = verf.f32.pop %v546
        %v647 = verf.f32.pop %v547
        %v648 = verf.f32.pop %v548
        %v649 = verf.f32.pop %v549
        %v650 = verf.f32.pop %v550
        %v651 = verf.f32.pop %v551
        %v652 = verf.f32.pop %v552
        %v653 = verf.f32.pop %v553
        %v654 = verf.f32.pop %v554
        %v655 = verf.f32.pop %v555
        %v656 = verf.f32.pop %v556
        %v657 = verf.f32.pop %v557
        %v658 = verf.f32.pop %v558
        %v659 = verf.f32.pop %v559
        %v660 = verf.f32.pop %v560
        %v661 = verf.f32.pop %v561
        %v662 = verf.f32.pop %v562
        %v663 = verf.f32.pop %v563
        %v664 = verf.f32.pop %v564
        %v665 = verf.f32.pop %v565
        %v666 = verf.f32.pop %v566
        %v667 = verf.f32.pop %v567
        %v668 = verf.f32.pop %v568
        %v669 = verf.f32.pop %v569
        %v670 = verf.f32.pop %v570
        %v671 = verf.f32.pop %v571
        %v672 = verf.f32.pop %v572
        %v673 = verf.f32.pop %v573
        %v674 = verf.f32.pop %v574
        %v675 = verf.f32.pop %v575
        %v676 = verf.f32.pop %v576
        %v677 = verf.f32.pop %v577
        %v678 = verf.f32.pop %v578
        %v679 = verf.f32.pop %v579
        %v680 = verf.f32.pop %v580
        %v681 = verf.f32.pop %v581
        %v682 = verf.f32.pop %v582
        %v683 = verf.f32.pop %v583
        %v684 = verf.f32.pop %v584
        %v685 = verf.f32.pop %v585
        %v686 = verf.f32.pop %v586
        %v687 = verf.f32.pop %v587
        %v688 = verf.f32.pop %v588
        %v689 = verf.f32.pop %v589
        %v690 = verf.f32.pop %v590
        %v691 = verf.f32.pop %v591
        %v692 = verf.f32.pop %v592
        %v693 = verf.f32.pop %v593
        %v694 = verf.f32.pop %v594
        %v695 = verf.f32.pop %v595
        %v696 = verf.f32.pop %v596
        %v697 = verf.f32.pop %v597
        %v698 = verf.f32.pop %v598
        %v699 = verf.f32.pop %v599
        %v700 = verf.f32.pop %v600
        %v701 = verf.f32.pop %v601
        %v702 = verf.f32.pop %v602
        %v703 = verf.f32.pop %v603
        %v704 = verf.f32.pop %v604
        %v705 = verf.f32.pop %v605
        %v706 = verf.f32.pop %v606
        %v707 = verf.f32.pop %v607
        %v708 = verf.f32.pop %v608
        %v709 = verf.f32.pop %v609
        %v710 = verf.f32.pop %v610
        %v711 = verf.f32.pop %v611
        %v712 = verf.f32.pop %v612
        %v713 = verf.f32.pop %v613
        %v714 = verf.f32.pop %v614
        %v715 = verf.f32.pop %v615
        %v716 = verf.f32.pop %v616
        %v717 = verf.f32.pop %v617
        %v718 = verf.f32.pop %v618
        %v719 = verf.f32.pop %v619
        %v720 = verf.f32.pop %v620
        %v721 = verf.f32.pop %v621
        %v722 = verf.f32.pop %v622
        %v723 = verf.f32.pop %v623
        %v724 = verf.f32.pop %v624
        %v725 = verf.f32.pop %v625
        %v726 = verf.f32.pop %v626
        %v727 = verf.f32.pop %v627
        %v728 = verf.f32.pop %v628
        %v729 = vadd.f32 %v629, 1.0
        %v730 = vadd.f32 %v630, 1.0
        %v731 = vadd.f32 %v631, 1.0
        %v732 = vadd.f32 %v632, 1.0
        %v733 = vadd.f32 %v633, 1.0
        %v734 = vadd.f32 %v634, 1.0
        %v735 = vadd.f32 %v635, 1.0
        %v736 = vadd.f32 %v636, 1.0
        %v737 = vadd.f32 %v637, 1.0
        %v738 = vadd.f32 %v638, 1.0
        %v739 = vadd.f32 %v639, 1.0
        %v740 = vadd.f32 %v640, 1.0
        %v741 = vadd.f32 %v641, 1.0
        %v742 = vadd.f32 %v642, 1.0
        %v743 = vadd.f32 %v643, 1.0
        %v744 = vadd.f32 %v644, 1.0
        %v745 = vadd.f32 %v645, 1.0
        %v746 = vadd.f32 %v646, 1.0
        %v747 = vadd.f32 %v647, 1.0
        %v748 = vadd.f32 %v648, 1.0
        %v749 = vadd.f32 %v649, 1.0
        %v750 = vadd.f32 %v650, 1.0
        %v751 = vadd.f32 %v651, 1.0
        %v752 = vadd.f32 %v652, 1.0
        %v753 = vadd.f32 %v653, 1.0
        %v754 = vadd.f32 %v654, 1.0
        %v755 = vadd.f32 %v655, 1.0
        %v756 = vadd.f32 %v656, 1.0
        %v757 = vadd.f32 %v657, 1.0
        %v758 = vadd.f32 %v658, 1.0
        %v759 = vadd.f32 %v659, 1.0
        %v760 = vadd.f32 %v660, 1.0
        %v761 = vadd.f32 %v661, 1.0
        %v762 = vadd.f32 %v662, 1.0
        %v763 = vadd.f32 %v663, 1.0
        %v764 = vadd.f32 %v664, 1.0
        %v765 = vadd.f32 %v665, 1.0
        %v766 = vadd.f32 %v666, 1.0
        %v767 = vadd.f32 %v667, 1.0
        %v768 = vadd.f32 %v668, 1.0
        %v769 = vadd.f32 %v669, 1.0
        %v770 = vadd.f32 %v670, 1.0
        %v771 = vadd.f32 %v671, 1.0
        %v772 = vadd.f32 %v672, 1.0
        %v773 = vadd.f32 %v673, 1.0
        %v774 = vadd.f32 %v674, 1.0
        %v775 = vadd.f32 %v675, 1.0
        %v776 = vadd.f32 %v676, 1.0
        %v777 = vadd.f32 %v677, 1.0
        %v778 = vadd.f32 %v678, 1.0
        %v779 = vadd.f32 %v679, 1.0
        %v780 = vadd.f32 %v680, 1.0
        %v781 = vadd.f32 %v681, 1.0
        %v782 = vadd.f32 %v682, 1.0
        %v783 = vadd.f32 %v683, 1.0
        %v784 = vadd.f32 %v684, 1.0
        %v785 = vadd.f32 %v685, 1.0
        %v786 = vadd.f32 %v686, 1.0
        %v787 = vadd.f32 %v687, 1.0
        %v788 = vadd.f32 %v688, 1.0
        %v789 = vadd.f32 %v689, 1.0
        %v790 = vadd.f32 %v690, 1.0
        %v791 = vadd.f32 %v691, 1.0
        %v792 = vadd.f32 %v692, 1.0
        %v793 = vadd.f32 %v693, 1.0
        %v794 = vadd.f32 %v694, 1.0
        %v795 = vadd.f32 %v695, 1.0
        %v796 = vadd.f32 %v696, 1.0
        %v797 = vadd.f32 %v697, 1.0
        %v798 = vadd.f32 %v698, 1.0
        %v799 = vadd.f32 %v699, 1.0
        %v800 = vadd.f32 %v700, 1.0
        %v801 = vadd.f32 %v701, 1.0
        %v802 = vadd.f32 %v702, 1.0
        %v803 = vadd.f32 %v703, 1.0
        %v804 = vadd.f32 %v704, 1.0
        %v805 = vadd.f32 %v705, 1.0
        %v806 = vadd.f32 %v706, 1.0
        %v807 = vadd.f32 %v707, 1.0
        %v808 = vadd.f32 %v708, 1.0
        %v809 = vadd.f32 %v709, 1.0
        %v810 = vadd.f32 %v710, 1.0
        %v811 = vadd.f32 %v711, 1.0
        %v812 = vadd.f32 %v712, 1.0
        %v813 = vadd.f32 %v713, 1.0
        %v814 = vadd.f32 %v714, 1.0
        %v815 = vadd.f32 %v715, 1.0
        %v816 = vadd.f32 %v716, 1.0
        %v817 = vadd.f32 %v717, 1.0
        %v818 = vadd.f32 %v718, 1.0
        %v819 = vadd.f32 %v719, 1.0
        %v820 = vadd.f32 %v720, 1.0
        %v821 = vadd.f32 %v721, 1.0
        %v822 = vadd.f32 %v722, 1.0
        %v823 = vadd.f32 %v723, 1.0
        %v824 = vadd.f32 %v724, 1.0
        %v825 = vadd.f32 %v725, 1.0
        %v826 = vadd.f32 %v726, 1.0
        %v827 = vadd.f32 %v727, 1.0
        %v828 = vadd.f32 %v728, 1.0
        %v829 = vmul.f32 %v429, %v729
        %v830 = vmul.f32 %v430, %v730
        %v831 = vmul.f32 %v431, %v731
        %v832 = vmul.f32 %v432, %v732
        %v833 = vmul.f32 %v433, %v733
        %v834 = vmul.f32 %v434, %v734
        %v835 = vmul.f32 %v435, %v735
        %v836 = vmul.f32 %v436, %v736
        %v837 = vmul.f32 %v437, %v737
        %v838 = vmul.f32 %v438, %v738
        %v839 = vmul.f32 %v439, %v739
        %v840 = vmul.f32 %v440, %v740
        %v841 = vmul.f32 %v441, %v741
        %v842 = vmul.f32 %v442, %v742
        %v843 = vmul.f32 %v443, %v743
        %v844 = vmul.f32 %v444, %v744
        %v845 = vmul.f32 %v445, %v745
        %v846 = vmul.f32 %v446, %v746
        %v847 = vmul.f32 %v447, %v747
        %v848 = vmul.f32 %v448, %v748
        %v849 = vmul.f32 %v449, %v749
        %v850 = vmul.f32 %v450, %v750
        %v851 = vmul.f32 %v451, %v751
        %v852 = vmul.f32 %v452, %v752
        %v853 = vmul.f32 %v453, %v753
        %v854 = vmul.f32 %v454, %v754
        %v855 = vmul.f32 %v455, %v755
        %v856 = vmul.f32 %v456, %v756
        %v857 = vmul.f32 %v457, %v757
        %v858 = vmul.f32 %v458, %v758
        %v859 = vmul.f32 %v459, %v759
        %v860 = vmul.f32 %v460, %v760
        %v861 = vmul.f32 %v461, %v761
        %v862 = vmul.f32 %v462, %v762
        %v863 = vmul.f32 %v463, %v763
        %v864 = vmul.f32 %v464, %v764
        %v865 = vmul.f32 %v465, %v765
        %v866 = vmul.f32 %v466, %v766
        %v867 = vmul.f32 %v467, %v767
        %v868 = vmul.f32 %v468, %v768
        %v869 = vmul.f32 %v469, %v769
        %v870 = vmul.f32 %v470, %v770
        %v871 = vmul.f32 %v471, %v771
        %v872 = vmul.f32 %v472, %v772
        %v873 = vmul.f32 %v473, %v773
        %v874 = vmul.f32 %v474, %v774
        %v875 = vmul.f32 %v475, %v775
        %v876 = vmul.f32 %v476, %v776
        %v877 = vmul.f32 %v477, %v777
        %v878 = vmul.f32 %v478, %v778
        %v879 = vmul.f32 %v479, %v779
        %v880 = vmul.f32 %v480, %v780
        %v881 = vmul.f32 %v481, %v781
        %v882 = vmul.f32 %v482, %v782
        %v883 = vmul.f32 %v483, %v783
        %v884 = vmul.f32 %v484, %v784
        %v885 = vmul.f32 %v485, %v785
        %v886 = vmul.f32 %v486, %v786
        %v887 = vmul.f32 %v487, %v787
        %v888 = vmul.f32 %v488, %v788
        %v889 = vmul.f32 %v489, %v789
        %v890 = vmul.f32 %v490, %v790
        %v891 = vmul.f32 %v491, %v791
        %v892 = vmul.f32 %v492, %v792
        %v893 = vmul.f32 %v493, %v793
        %v894 = vmul.f32 %v494, %v794
        %v895 = vmul.f32 %v495, %v795
        %v896 = vmul.f32 %v496, %v796
        %v897 = vmul.f32 %v497, %v797
        %v898 = vmul.f32 %v498, %v798
        %v899 = vmul.f32 %v499, %v799
        %v900 = vmul.f32 %v500, %v800
        %v901 = vmul.f32 %v501, %v801
        %v902 = vmul.f32 %v502, %v802
        %v903 = vmul.f32 %v503, %v803
        %v904 = vmul.f32 %v504, %v804
        %v905 = vmul.f32 %v505, %v805
        %v906 = vmul.f32 %v506, %v806
        %v907 = vmul.f32 %v507, %v807
        %v908 = vmul.f32 %v508, %v808
        %v909 = vmul.f32 %v509, %v809
        %v910 = vmul.f32 %v510, %v810
        %v911 = vmul.f32 %v511, %v811
        %v912 = vmul.f32 %v512, %v812
        %v913 = vmul.f32 %v513, %v813
        %v914 = vmul.f32 %v514, %v814
        %v915 = vmul.f32 %v515, %v815
        %v916 = vmul.f32 %v516, %v816
        %v917 = vmul.f32 %v517, %v817
        %v918 = vmul.f32 %v518, %v818
        %v919 = vmul.f32 %v519, %v819
        %v920 = vmul.f32 %v520, %v820
        %v921 = vmul.f32 %v521, %v821
        %v922 = vmul.f32 %v522, %v822
        %v923 = vmul.f32 %v523, %v823
        %v924 = vmul.f32 %v524, %v824
        %v925 = vmul.f32 %v525, %v825
        %v926 = vmul.f32 %v526, %v826
        %v927 = vmul.f32 %v527, %v827
        %v928 = vmul.f32 %v528, %v828
        %v929 = vld [vmem:[#allocation8] sm:$0xff]
        %v930 = vld [vmem:[#allocation8 + $0x8] sm:$0xff]
        %v931 = vld [vmem:[#allocation8 + $0x10] sm:$0xff]
        %v932 = vld [vmem:[#allocation8 + $0x18] sm:$0xff]
        %v933 = vld [vmem:[#allocation8 + $0x20] sm:$0xff]
        %v934 = vld [vmem:[#allocation8 + $0x28] sm:$0xff]
        %v935 = vld [vmem:[#allocation8 + $0x30] sm:$0xff]
        %v936 = vld [vmem:[#allocation8 + $0x38] sm:$0xff]
        %v937 = vld [vmem:[#allocation8 + $0x40] sm:$0xff]
        %v938 = vld [vmem:[#allocation8 + $0x48] sm:$0xff]
        %v939 = vld [vmem:[#allocation8 + $0x50] sm:$0xff]
        %v940 = vld [vmem:[#allocation8 + $0x58] sm:$0xff]
        %v941 = vld [vmem:[#allocation8 + $0x60] sm:$0xff]
        %v942 = vld [vmem:[#allocation8 + $0x68] sm:$0xff]
        %v943 = vld [vmem:[#allocation8 + $0x70] sm:$0xff]
        %v944 = vld [vmem:[#allocation8 + $0x78] sm:$0xff]
        %v945 = vld [vmem:[#allocation8 + $0x80] sm:$0xff]
        %v946 = vld [vmem:[#allocation8 + $0x88] sm:$0xff]
        %v947 = vld [vmem:[#allocation8 + $0x90] sm:$0xff]
        %v948 = vld [vmem:[#allocation8 + $0x98] sm:$0xff]
        %v949 = vld [vmem:[#allocation8 + $0xa0] sm:$0xff]
        %v950 = vld [vmem:[#allocation8 + $0xa8] sm:$0xff]
        %v951 = vld [vmem:[#allocation8 + $0xb0] sm:$0xff]
        %v952 = vld [vmem:[#allocation8 + $0xb8] sm:$0xff]
        %v953 = vld [vmem:[#allocation8 + $0xc0] sm:$0xff]
        %v954 = vld [vmem:[#allocation8 + $0xc8] sm:$0xff]
        %v955 = vld [vmem:[#allocation8 + $0xd0] sm:$0xff]
        %v956 = vld [vmem:[#allocation8 + $0xd8] sm:$0xff]
        %v957 = vld [vmem:[#allocation8 + $0xe0] sm:$0xff]
        %v958 = vld [vmem:[#allocation8 + $0xe8] sm:$0xff]
        %v959 = vld [vmem:[#allocation8 + $0xf0] sm:$0xff]
        %v960 = vld [vmem:[#allocation8 + $0xf8] sm:$0xff]
        %v961 = vld [vmem:[#allocation8 + $0x100] sm:$0xff]
        %v962 = vld [vmem:[#allocation8 + $0x108] sm:$0xff]
        %v963 = vld [vmem:[#allocation8 + $0x110] sm:$0xff]
        %v964 = vld [vmem:[#allocation8 + $0x118] sm:$0xff]
        %v965 = vld [vmem:[#allocation8 + $0x120] sm:$0xff]
        %v966 = vld [vmem:[#allocation8 + $0x128] sm:$0xff]
        %v967 = vld [vmem:[#allocation8 + $0x130] sm:$0xff]
        %v968 = vld [vmem:[#allocation8 + $0x138] sm:$0xff]
        %v969 = vld [vmem:[#allocation8 + $0x140] sm:$0xff]
        %v970 = vld [vmem:[#allocation8 + $0x148] sm:$0xff]
        %v971 = vld [vmem:[#allocation8 + $0x150] sm:$0xff]
        %v972 = vld [vmem:[#allocation8 + $0x158] sm:$0xff]
        %v973 = vld [vmem:[#allocation8 + $0x160] sm:$0xff]
        %v974 = vld [vmem:[#allocation8 + $0x168] sm:$0xff]
        %v975 = vld [vmem:[#allocation8 + $0x170] sm:$0xff]
        %v976 = vld [vmem:[#allocation8 + $0x178] sm:$0xff]
        %v977 = vld [vmem:[#allocation8 + $0x180] sm:$0xff]
        %v978 = vld [vmem:[#allocation8 + $0x188] sm:$0xff]
        %v979 = vld [vmem:[#allocation8 + $0x190] sm:$0xff]
        %v980 = vld [vmem:[#allocation8 + $0x198] sm:$0xff]
        %v981 = vld [vmem:[#allocation8 + $0x1a0] sm:$0xff]
        %v982 = vld [vmem:[#allocation8 + $0x1a8] sm:$0xff]
        %v983 = vld [vmem:[#allocation8 + $0x1b0] sm:$0xff]
        %v984 = vld [vmem:[#allocation8 + $0x1b8] sm:$0xff]
        %v985 = vld [vmem:[#allocation8 + $0x1c0] sm:$0xff]
        %v986 = vld [vmem:[#allocation8 + $0x1c8] sm:$0xff]
        %v987 = vld [vmem:[#allocation8 + $0x1d0] sm:$0xff]
        %v988 = vld [vmem:[#allocation8 + $0x1d8] sm:$0xff]
        %v989 = vld [vmem:[#allocation8 + $0x1e0] sm:$0xff]
        %v990 = vld [vmem:[#allocation8 + $0x1e8] sm:$0xff]
        %v991 = vld [vmem:[#allocation8 + $0x1f0] sm:$0xff]
        %v992 = vld [vmem:[#allocation8 + $0x1f8] sm:$0xff]
        %v993 = vld [vmem:[#allocation8 + $0x200] sm:$0xff]
        %v994 = vld [vmem:[#allocation8 + $0x208] sm:$0xff]
        %v995 = vld [vmem:[#allocation8 + $0x210] sm:$0xff]
        %v996 = vld [vmem:[#allocation8 + $0x218] sm:$0xff]
        %v997 = vld [vmem:[#allocation8 + $0x220] sm:$0xff]
        %v998 = vld [vmem:[#allocation8 + $0x228] sm:$0xff]
        %v999 = vld [vmem:[#allocation8 + $0x230] sm:$0xff]
        %v1000 = vld [vmem:[#allocation8 + $0x238] sm:$0xff]
        %v1001 = vld [vmem:[#allocation8 + $0x240] sm:$0xf]
        %v1002 = vld [vmem:[#allocation8 + $0x248] sm:$0xf]
        %v1003 = vld [vmem:[#allocation8 + $0x250] sm:$0xf]
        %v1004 = vpack.c.bf16 %v833, %v829
        %v1005 = vpack.c.bf16 %v834, %v830
        %v1006 = vpack.c.bf16 %v835, %v831
        %v1007 = vpack.c.bf16 %v836, %v832
        %v1008 = vpack.c.bf16 %v841, %v837
        %v1009 = vpack.c.bf16 %v842, %v838
        %v1010 = vpack.c.bf16 %v843, %v839
        %v1011 = vpack.c.bf16 %v844, %v840
        %v1012 = vpack.c.bf16 %v849, %v845
        %v1013 = vpack.c.bf16 %v850, %v846
        %v1014 = vpack.c.bf16 %v851, %v847
        %v1015 = vpack.c.bf16 %v852, %v848
        %v1016 = vpack.c.bf16 %v857, %v853
        %v1017 = vpack.c.bf16 %v858, %v854
        %v1018 = vpack.c.bf16 %v859, %v855
        %v1019 = vpack.c.bf16 %v860, %v856
        %v1020 = vpack.c.bf16 %v865, %v861
        %v1021 = vpack.c.bf16 %v866, %v862
        %v1022 = vpack.c.bf16 %v867, %v863
        %v1023 = vpack.c.bf16 %v868, %v864
        %v1024 = vpack.c.bf16 %v873, %v869
        %v1025 = vpack.c.bf16 %v874, %v870
        %v1026 = vpack.c.bf16 %v875, %v871
        %v1027 = vpack.c.bf16 %v876, %v872
        %v1028 = vpack.c.bf16 %v881, %v877
        %v1029 = vpack.c.bf16 %v882, %v878
        %v1030 = vpack.c.bf16 %v883, %v879
        %v1031 = vpack.c.bf16 %v884, %v880
        %v1032 = vpack.c.bf16 %v889, %v885
        %v1033 = vpack.c.bf16 %v890, %v886
        %v1034 = vpack.c.bf16 %v891, %v887
        %v1035 = vpack.c.bf16 %v892, %v888
        %v1036 = vpack.c.bf16 %v897, %v893
        %v1037 = vpack.c.bf16 %v898, %v894
        %v1038 = vpack.c.bf16 %v899, %v895
        %v1039 = vpack.c.bf16 %v900, %v896
        %v1040 = vpack.c.bf16 %v905, %v901
        %v1041 = vpack.c.bf16 %v906, %v902
        %v1042 = vpack.c.bf16 %v907, %v903
        %v1043 = vpack.c.bf16 %v908, %v904
        %v1044 = vpack.c.bf16 %v913, %v909
        %v1045 = vpack.c.bf16 %v914, %v910
        %v1046 = vpack.c.bf16 %v915, %v911
        %v1047 = vpack.c.bf16 %v916, %v912
        %v1048 = vpack.c.bf16 %v921, %v917
        %v1049 = vpack.c.bf16 %v922, %v918
        %v1050 = vpack.c.bf16 %v923, %v919
        %v1051 = vpack.c.bf16 %v924, %v920
        %v1052 = vpack.c.bf16 %v925, %v925
        %v1053 = vpack.c.bf16 %v926, %v926
        %v1054 = vpack.c.bf16 %v927, %v927
        %v1055 = vpack.c.bf16 %v928, %v928
        %v1056 = vld [vmem:[%s203] sm:$0xff]
        %v1057 = vld [vmem:[%s203 + $0x8] sm:$0xf]
        %v1058 = vld [vmem:[%s203 + $0xc] sm:$0xff]
        %v1059 = vld [vmem:[%s203 + $0x14] sm:$0xf]
        %v1060 = vld [vmem:[%s203 + $0x18] sm:$0xff]
        %v1061 = vld [vmem:[%s203 + $0x20] sm:$0xf]
        %v1062 = vld [vmem:[%s203 + $0x24] sm:$0xff]
        %v1063 = vld [vmem:[%s203 + $0x2c] sm:$0xf]
        %v1064 = vld [vmem:[%s203 + $0x30] sm:$0xff]
        %v1065 = vld [vmem:[%s203 + $0x38] sm:$0xf]
        %v1066 = vld [vmem:[%s203 + $0x3c] sm:$0xff]
        %v1067 = vld [vmem:[%s203 + $0x44] sm:$0xf]
        %v1068 = vld [vmem:[%s203 + $0x48] sm:$0xff]
        %v1069 = vld [vmem:[%s203 + $0x50] sm:$0xf]
        %v1070 = vld [vmem:[%s203 + $0x54] sm:$0xff]
        %v1071 = vld [vmem:[%s203 + $0x5c] sm:$0xf]
        %v1072 = vld [vmem:[%s203 + $0x60] sm:$0xff]
        %v1073 = vld [vmem:[%s203 + $0x68] sm:$0xf]
        %v1074 = vld [vmem:[%s203 + $0x6c] sm:$0xff]
        %v1075 = vld [vmem:[%s203 + $0x74] sm:$0xf]
        %v1076 = vld [vmem:[%s203 + $0x78] sm:$0xff]
        %v1077 = vld [vmem:[%s203 + $0x80] sm:$0xf]
        %v1078 = vld [vmem:[%s203 + $0x84] sm:$0xff]
        %v1079 = vld [vmem:[%s203 + $0x8c] sm:$0xf]
        %v1080 = vld [vmem:[%s203 + $0x90] sm:$0xff]
        %v1081 = vld [vmem:[%s203 + $0x98] sm:$0xf]
        %v1082 = vld [vmem:[%s203 + $0x9c] sm:$0xff]
        %v1083 = vld [vmem:[%s203 + $0xa4] sm:$0xf]
        %v1084 = vld [vmem:[%s203 + $0xa8] sm:$0xff]
        %v1085 = vld [vmem:[%s203 + $0xb0] sm:$0xf]
        %v1086 = vld [vmem:[%s203 + $0xb4] sm:$0xff]
        %v1087 = vld [vmem:[%s203 + $0xbc] sm:$0xf]
        %v1088 = vld [vmem:[%s203 + $0xc0] sm:$0xff]
        %v1089 = vld [vmem:[%s203 + $0xc8] sm:$0xf]
        %v1090 = vld [vmem:[%s203 + $0xcc] sm:$0xff]
        %v1091 = vld [vmem:[%s203 + $0xd4] sm:$0xf]
        %v1092 = vld [vmem:[%s203 + $0xd8] sm:$0xff]
        %v1093 = vld [vmem:[%s203 + $0xe0] sm:$0xf]
        %v1094 = vld [vmem:[%s203 + $0xe4] sm:$0xff]
        %v1095 = vld [vmem:[%s203 + $0xec] sm:$0xf]
        %v1096 = vld [vmem:[%s203 + $0xf0] sm:$0xff]
        %v1097 = vld [vmem:[%s203 + $0xf8] sm:$0xf]
        %v1098 = vld [vmem:[%s203 + $0xfc] sm:$0xff]
        %v1099 = vld [vmem:[%s203 + $0x104] sm:$0xf]
        %v1100 = vld [vmem:[%s203 + $0x108] sm:$0xff]
        %v1101 = vld [vmem:[%s203 + $0x110] sm:$0xf]
        %v1102 = vld [vmem:[%s203 + $0x114] sm:$0xff]
        %v1103 = vld [vmem:[%s203 + $0x11c] sm:$0xf]
        %v1104 = vld [vmem:[%s203 + $0x120] sm:$0xff]
        %v1105 = vld [vmem:[%s203 + $0x128] sm:$0xf]
        %v1106 = vld [vmem:[%s203 + $0x12c] sm:$0xff]
        %v1107 = vld [vmem:[%s203 + $0x134] sm:$0xf]
        %v1108 = vld [vmem:[%s203 + $0x138] sm:$0xff]
        %v1109 = vld [vmem:[%s203 + $0x140] sm:$0xf]
        %v1110 = vld [vmem:[%s203 + $0x144] sm:$0xff]
        %v1111 = vld [vmem:[%s203 + $0x14c] sm:$0xf]
        %v1112 = vld [vmem:[%s203 + $0x150] sm:$0xff]
        %v1113 = vld [vmem:[%s203 + $0x158] sm:$0xf]
        %v1114 = vld [vmem:[%s203 + $0x15c] sm:$0xff]
        %v1115 = vld [vmem:[%s203 + $0x164] sm:$0xf]
        %v1116 = vld [vmem:[%s203 + $0x168] sm:$0xff]
        %v1117 = vld [vmem:[%s203 + $0x170] sm:$0xf]
        %v1118 = vld [vmem:[%s203 + $0x174] sm:$0xff]
        %v1119 = vld [vmem:[%s203 + $0x17c] sm:$0xf]
        %v1120 = vld [vmem:[%s203 + $0x180] sm:$0xff]
        %v1121 = vld [vmem:[%s203 + $0x188] sm:$0xf]
        %v1122 = vld [vmem:[%s203 + $0x18c] sm:$0xff]
        %v1123 = vld [vmem:[%s203 + $0x194] sm:$0xf]
        %v1124 = vld [vmem:[%s203 + $0x198] sm:$0xff]
        %v1125 = vld [vmem:[%s203 + $0x1a0] sm:$0xf]
        %v1126 = vld [vmem:[%s203 + $0x1a4] sm:$0xff]
        %v1127 = vld [vmem:[%s203 + $0x1ac] sm:$0xf]
        %v1128 = vld [vmem:[%s203 + $0x1b0] sm:$0xff]
        %v1129 = vld [vmem:[%s203 + $0x1b8] sm:$0xf]
        %v1130 = vld [vmem:[%s203 + $0x1bc] sm:$0xff]
        %v1131 = vld [vmem:[%s203 + $0x1c4] sm:$0xf]
        %v1132 = vld [vmem:[%s203 + $0x1c8] sm:$0xff]
        %v1133 = vld [vmem:[%s203 + $0x1d0] sm:$0xf]
        %v1134 = vld [vmem:[%s203 + $0x1d4] sm:$0xff]
        %v1135 = vld [vmem:[%s203 + $0x1dc] sm:$0xf]
        %v1136 = vld [vmem:[%s203 + $0x1e0] sm:$0xff]
        %v1137 = vld [vmem:[%s203 + $0x1e8] sm:$0xf]
        %v1138 = vld [vmem:[%s203 + $0x1ec] sm:$0xff]
        %v1139 = vld [vmem:[%s203 + $0x1f4] sm:$0xf]
        %v1140 = vld [vmem:[%s203 + $0x1f8] sm:$0xff]
        %v1141 = vld [vmem:[%s203 + $0x200] sm:$0xf]
        %v1142 = vld [vmem:[%s203 + $0x204] sm:$0xff]
        %v1143 = vld [vmem:[%s203 + $0x20c] sm:$0xf]
        %v1144 = vld [vmem:[%s203 + $0x210] sm:$0xff]
        %v1145 = vld [vmem:[%s203 + $0x218] sm:$0xf]
        %v1146 = vld [vmem:[%s203 + $0x21c] sm:$0xff]
        %v1147 = vld [vmem:[%s203 + $0x224] sm:$0xf]
        %v1148 = vld [vmem:[%s203 + $0x228] sm:$0xff]
        %v1149 = vld [vmem:[%s203 + $0x230] sm:$0xf]
        %v1150 = vld [vmem:[%s203 + $0x234] sm:$0xff]
        %v1151 = vld [vmem:[%s203 + $0x23c] sm:$0xf]
        %v1152 = vld [vmem:[%s203 + $0x240] sm:$0xff]
        %v1153 = vld [vmem:[%s203 + $0x248] sm:$0xf]
        %v1154 = vld [vmem:[%s203 + $0x24c] sm:$0xff]
        %v1155 = vld [vmem:[%s203 + $0x254] sm:$0xf]
        %v1156 = vld [vmem:[%s203 + $0x258] sm:$0xff]
        %v1157 = vld [vmem:[%s203 + $0x260] sm:$0xf]
        %v1158 = vld [vmem:[%s203 + $0x264] sm:$0xff]
        %v1159 = vld [vmem:[%s203 + $0x26c] sm:$0xf]
        %v1160 = vld [vmem:[%s203 + $0x270] sm:$0xff]
        %v1161 = vld [vmem:[%s203 + $0x278] sm:$0xf]
        %v1162 = vld [vmem:[%s203 + $0x27c] sm:$0xff]
        %v1163 = vld [vmem:[%s203 + $0x284] sm:$0xf]
        %v1164 = vld [vmem:[%s203 + $0x288] sm:$0xff]
        %v1165 = vld [vmem:[%s203 + $0x290] sm:$0xf]
        %v1166 = vld [vmem:[%s203 + $0x294] sm:$0xff]
        %v1167 = vld [vmem:[%s203 + $0x29c] sm:$0xf]
        %v1168 = vld [vmem:[%s203 + $0x2a0] sm:$0xff]
        %v1169 = vld [vmem:[%s203 + $0x2a8] sm:$0xf]
        %v1170 = vld [vmem:[%s203 + $0x2ac] sm:$0xff]
        %v1171 = vld [vmem:[%s203 + $0x2b4] sm:$0xf]
        %v1172 = vld [vmem:[%s203 + $0x2b8] sm:$0xff]
        %v1173 = vld [vmem:[%s203 + $0x2c0] sm:$0xf]
        %v1174 = vld [vmem:[%s203 + $0x2c4] sm:$0xff]
        %v1175 = vld [vmem:[%s203 + $0x2cc] sm:$0xf]
        %v1176 = vld [vmem:[%s203 + $0x2d0] sm:$0xff]
        %v1177 = vld [vmem:[%s203 + $0x2d8] sm:$0xf]
        %v1178 = vld [vmem:[%s203 + $0x2dc] sm:$0xff]
        %v1179 = vld [vmem:[%s203 + $0x2e4] sm:$0xf]
        %v1180 = vld [vmem:[%s203 + $0x2e8] sm:$0xff]
        %v1181 = vld [vmem:[%s203 + $0x2f0] sm:$0xf]
        %v1182 = vld [vmem:[%s203 + $0x2f4] sm:$0xff]
        %v1183 = vld [vmem:[%s203 + $0x2fc] sm:$0xf]
        %v1312 = vunpack.c.l.b16 %v1056
        %v1313 = vunpack.c.h.b16 %v1056
        %v1314 = vunpack.c.l.b16 %v1057
        %v1315 = vunpack.c.l.b16 %v1058
        %v1316 = vunpack.c.h.b16 %v1058
        %v1317 = vunpack.c.l.b16 %v1059
        %v1318 = vunpack.c.l.b16 %v1060
        %v1319 = vunpack.c.h.b16 %v1060
        %v1320 = vunpack.c.l.b16 %v1061
        %v1321 = vunpack.c.l.b16 %v1062
        %v1322 = vunpack.c.h.b16 %v1062
        %v1323 = vunpack.c.l.b16 %v1063
        %v1324 = vunpack.c.l.b16 %v1064
        %v1325 = vunpack.c.h.b16 %v1064
        %v1326 = vunpack.c.l.b16 %v1065
        %v1327 = vunpack.c.l.b16 %v1066
        %v1328 = vunpack.c.h.b16 %v1066
        %v1329 = vunpack.c.l.b16 %v1067
        %v1330 = vunpack.c.l.b16 %v1068
        %v1331 = vunpack.c.h.b16 %v1068
        %v1332 = vunpack.c.l.b16 %v1069
        %v1333 = vunpack.c.l.b16 %v1070
        %v1334 = vunpack.c.h.b16 %v1070
        %v1335 = vunpack.c.l.b16 %v1071
        %v1336 = vunpack.c.l.b16 %v1072
        %v1337 = vunpack.c.h.b16 %v1072
        %v1338 = vunpack.c.l.b16 %v1073
        %v1339 = vunpack.c.l.b16 %v1074
        %v1340 = vunpack.c.h.b16 %v1074
        %v1341 = vunpack.c.l.b16 %v1075
        %v1342 = vunpack.c.l.b16 %v1076
        %v1343 = vunpack.c.h.b16 %v1076
        %v1344 = vunpack.c.l.b16 %v1077
        %v1345 = vunpack.c.l.b16 %v1078
        %v1346 = vunpack.c.h.b16 %v1078
        %v1347 = vunpack.c.l.b16 %v1079
        %v1348 = vunpack.c.l.b16 %v1080
        %v1349 = vunpack.c.h.b16 %v1080
        %v1350 = vunpack.c.l.b16 %v1081
        %v1351 = vunpack.c.l.b16 %v1082
        %v1352 = vunpack.c.h.b16 %v1082
        %v1353 = vunpack.c.l.b16 %v1083
        %v1354 = vunpack.c.l.b16 %v1084
        %v1355 = vunpack.c.h.b16 %v1084
        %v1356 = vunpack.c.l.b16 %v1085
        %v1357 = vunpack.c.l.b16 %v1086
        %v1358 = vunpack.c.h.b16 %v1086
        %v1359 = vunpack.c.l.b16 %v1087
        %v1360 = vunpack.c.l.b16 %v1088
        %v1361 = vunpack.c.h.b16 %v1088
        %v1362 = vunpack.c.l.b16 %v1089
        %v1363 = vunpack.c.l.b16 %v1090
        %v1364 = vunpack.c.h.b16 %v1090
        %v1365 = vunpack.c.l.b16 %v1091
        %v1366 = vunpack.c.l.b16 %v1092
        %v1367 = vunpack.c.h.b16 %v1092
        %v1368 = vunpack.c.l.b16 %v1093
        %v1369 = vunpack.c.l.b16 %v1094
        %v1370 = vunpack.c.h.b16 %v1094
        %v1371 = vunpack.c.l.b16 %v1095
        %v1372 = vunpack.c.l.b16 %v1096
        %v1373 = vunpack.c.h.b16 %v1096
        %v1374 = vunpack.c.l.b16 %v1097
        %v1375 = vunpack.c.l.b16 %v1098
        %v1376 = vunpack.c.h.b16 %v1098
        %v1377 = vunpack.c.l.b16 %v1099
        %v1378 = vunpack.c.l.b16 %v1100
        %v1379 = vunpack.c.h.b16 %v1100
        %v1380 = vunpack.c.l.b16 %v1101
        %v1381 = vunpack.c.l.b16 %v1102
        %v1382 = vunpack.c.h.b16 %v1102
        %v1383 = vunpack.c.l.b16 %v1103
        %v1384 = vunpack.c.l.b16 %v1104
        %v1385 = vunpack.c.h.b16 %v1104
        %v1386 = vunpack.c.l.b16 %v1105
        %v1387 = vunpack.c.l.b16 %v1106
        %v1388 = vunpack.c.h.b16 %v1106
        %v1389 = vunpack.c.l.b16 %v1107
        %v1390 = vunpack.c.l.b16 %v1108
        %v1391 = vunpack.c.h.b16 %v1108
        %v1392 = vunpack.c.l.b16 %v1109
        %v1393 = vunpack.c.l.b16 %v1110
        %v1394 = vunpack.c.h.b16 %v1110
        %v1395 = vunpack.c.l.b16 %v1111
        %v1396 = vunpack.c.l.b16 %v1112
        %v1397 = vunpack.c.h.b16 %v1112
        %v1398 = vunpack.c.l.b16 %v1113
        %v1399 = vunpack.c.l.b16 %v1114
        %v1400 = vunpack.c.h.b16 %v1114
        %v1401 = vunpack.c.l.b16 %v1115
        %v1402 = vunpack.c.l.b16 %v1116
        %v1403 = vunpack.c.h.b16 %v1116
        %v1404 = vunpack.c.l.b16 %v1117
        %v1405 = vunpack.c.l.b16 %v1118
        %v1406 = vunpack.c.h.b16 %v1118
        %v1407 = vunpack.c.l.b16 %v1119
        %v1408 = vunpack.c.l.b16 %v1120
        %v1409 = vunpack.c.h.b16 %v1120
        %v1410 = vunpack.c.l.b16 %v1121
        %v1411 = vunpack.c.l.b16 %v1122
        %v1412 = vunpack.c.h.b16 %v1122
        %v1413 = vunpack.c.l.b16 %v1123
        %v1414 = vunpack.c.l.b16 %v1124
        %v1415 = vunpack.c.h.b16 %v1124
        %v1416 = vunpack.c.l.b16 %v1125
        %v1417 = vunpack.c.l.b16 %v1126
        %v1418 = vunpack.c.h.b16 %v1126
        %v1419 = vunpack.c.l.b16 %v1127
        %v1420 = vunpack.c.l.b16 %v1128
        %v1421 = vunpack.c.h.b16 %v1128
        %v1422 = vunpack.c.l.b16 %v1129
        %v1423 = vunpack.c.l.b16 %v1130
        %v1424 = vunpack.c.h.b16 %v1130
        %v1425 = vunpack.c.l.b16 %v1131
        %v1426 = vunpack.c.l.b16 %v1132
        %v1427 = vunpack.c.h.b16 %v1132
        %v1428 = vunpack.c.l.b16 %v1133
        %v1429 = vunpack.c.l.b16 %v1134
        %v1430 = vunpack.c.h.b16 %v1134
        %v1431 = vunpack.c.l.b16 %v1135
        %v1432 = vunpack.c.l.b16 %v1136
        %v1433 = vunpack.c.h.b16 %v1136
        %v1434 = vunpack.c.l.b16 %v1137
        %v1435 = vunpack.c.l.b16 %v1138
        %v1436 = vunpack.c.h.b16 %v1138
        %v1437 = vunpack.c.l.b16 %v1139
        %v1438 = vunpack.c.l.b16 %v1140
        %v1439 = vunpack.c.h.b16 %v1140
        %v1440 = vunpack.c.l.b16 %v1141
        %v1441 = vunpack.c.l.b16 %v1142
        %v1442 = vunpack.c.h.b16 %v1142
        %v1443 = vunpack.c.l.b16 %v1143
        %v1444 = vunpack.c.l.b16 %v1144
        %v1445 = vunpack.c.h.b16 %v1144
        %v1446 = vunpack.c.l.b16 %v1145
        %v1447 = vunpack.c.l.b16 %v1146
        %v1448 = vunpack.c.h.b16 %v1146
        %v1449 = vunpack.c.l.b16 %v1147
        %v1450 = vunpack.c.l.b16 %v1148
        %v1451 = vunpack.c.h.b16 %v1148
        %v1452 = vunpack.c.l.b16 %v1149
        %v1453 = vunpack.c.l.b16 %v1150
        %v1454 = vunpack.c.h.b16 %v1150
        %v1455 = vunpack.c.l.b16 %v1151
        %v1456 = vunpack.c.l.b16 %v1152
        %v1457 = vunpack.c.h.b16 %v1152
        %v1458 = vunpack.c.l.b16 %v1153
        %v1459 = vunpack.c.l.b16 %v1154
        %v1460 = vunpack.c.h.b16 %v1154
        %v1461 = vunpack.c.l.b16 %v1155
        %v1462 = vunpack.c.l.b16 %v1156
        %v1463 = vunpack.c.h.b16 %v1156
        %v1464 = vunpack.c.l.b16 %v1157
        %v1465 = vunpack.c.l.b16 %v1158
        %v1466 = vunpack.c.h.b16 %v1158
        %v1467 = vunpack.c.l.b16 %v1159
        %v1468 = vunpack.c.l.b16 %v1160
        %v1469 = vunpack.c.h.b16 %v1160
        %v1470 = vunpack.c.l.b16 %v1161
        %v1471 = vunpack.c.l.b16 %v1162
        %v1472 = vunpack.c.h.b16 %v1162
        %v1473 = vunpack.c.l.b16 %v1163
        %v1474 = vunpack.c.l.b16 %v1164
        %v1475 = vunpack.c.h.b16 %v1164
        %v1476 = vunpack.c.l.b16 %v1165
        %v1477 = vunpack.c.l.b16 %v1166
        %v1478 = vunpack.c.h.b16 %v1166
        %v1479 = vunpack.c.l.b16 %v1167
        %v1480 = vunpack.c.l.b16 %v1168
        %v1481 = vunpack.c.h.b16 %v1168
        %v1482 = vunpack.c.l.b16 %v1169
        %v1483 = vunpack.c.l.b16 %v1170
        %v1484 = vunpack.c.h.b16 %v1170
        %v1485 = vunpack.c.l.b16 %v1171
        %v1486 = vunpack.c.l.b16 %v1172
        %v1487 = vunpack.c.h.b16 %v1172
        %v1488 = vunpack.c.l.b16 %v1173
        %v1489 = vunpack.c.l.b16 %v1174
        %v1490 = vunpack.c.h.b16 %v1174
        %v1491 = vunpack.c.l.b16 %v1175
        %v1492 = vunpack.c.l.b16 %v1176
        %v1493 = vunpack.c.h.b16 %v1176
        %v1494 = vunpack.c.l.b16 %v1177
        %v1495 = vunpack.c.l.b16 %v1178
        %v1496 = vunpack.c.h.b16 %v1178
        %v1497 = vunpack.c.l.b16 %v1179
        %v1498 = vunpack.c.l.b16 %v1180
        %v1499 = vunpack.c.h.b16 %v1180
        %v1500 = vunpack.c.l.b16 %v1181
        %v1501 = vunpack.c.l.b16 %v1182
        %v1502 = vunpack.c.h.b16 %v1182
        %v1503 = vunpack.c.l.b16 %v1183
        %v1504 = vpack.c.b16 %v1315, %v1312
        %v1505 = vpack.c.b16 %v1316, %v1313
        %v1506 = vpack.c.b16 %v1317, %v1314
        %v1507 = vpack.c.b16 %v1321, %v1318
        %v1508 = vpack.c.b16 %v1322, %v1319
        %v1509 = vpack.c.b16 %v1323, %v1320
        %v1510 = vpack.c.b16 %v1327, %v1324
        %v1511 = vpack.c.b16 %v1328, %v1325
        %v1512 = vpack.c.b16 %v1329, %v1326
        %v1513 = vpack.c.b16 %v1333, %v1330
        %v1514 = vpack.c.b16 %v1334, %v1331
        %v1515 = vpack.c.b16 %v1335, %v1332
        %v1516 = vpack.c.b16 %v1339, %v1336
        %v1517 = vpack.c.b16 %v1340, %v1337
        %v1518 = vpack.c.b16 %v1341, %v1338
        %v1519 = vpack.c.b16 %v1345, %v1342
        %v1520 = vpack.c.b16 %v1346, %v1343
        %v1521 = vpack.c.b16 %v1347, %v1344
        %v1522 = vpack.c.b16 %v1351, %v1348
        %v1523 = vpack.c.b16 %v1352, %v1349
        %v1524 = vpack.c.b16 %v1353, %v1350
        %v1525 = vpack.c.b16 %v1357, %v1354
        %v1526 = vpack.c.b16 %v1358, %v1355
        %v1527 = vpack.c.b16 %v1359, %v1356
        %v1528 = vpack.c.b16 %v1363, %v1360
        %v1529 = vpack.c.b16 %v1364, %v1361
        %v1530 = vpack.c.b16 %v1365, %v1362
        %v1531 = vpack.c.b16 %v1369, %v1366
        %v1532 = vpack.c.b16 %v1370, %v1367
        %v1533 = vpack.c.b16 %v1371, %v1368
        %v1534 = vpack.c.b16 %v1375, %v1372
        %v1535 = vpack.c.b16 %v1376, %v1373
        %v1536 = vpack.c.b16 %v1377, %v1374
        %v1537 = vpack.c.b16 %v1381, %v1378
        %v1538 = vpack.c.b16 %v1382, %v1379
        %v1539 = vpack.c.b16 %v1383, %v1380
        %v1540 = vpack.c.b16 %v1387, %v1384
        %v1541 = vpack.c.b16 %v1388, %v1385
        %v1542 = vpack.c.b16 %v1389, %v1386
        %v1543 = vpack.c.b16 %v1393, %v1390
        %v1544 = vpack.c.b16 %v1394, %v1391
        %v1545 = vpack.c.b16 %v1395, %v1392
        %v1546 = vpack.c.b16 %v1399, %v1396
        %v1547 = vpack.c.b16 %v1400, %v1397
        %v1548 = vpack.c.b16 %v1401, %v1398
        %v1549 = vpack.c.b16 %v1405, %v1402
        %v1550 = vpack.c.b16 %v1406, %v1403
        %v1551 = vpack.c.b16 %v1407, %v1404
        %v1552 = vpack.c.b16 %v1411, %v1408
        %v1553 = vpack.c.b16 %v1412, %v1409
        %v1554 = vpack.c.b16 %v1413, %v1410
        %v1555 = vpack.c.b16 %v1417, %v1414
        %v1556 = vpack.c.b16 %v1418, %v1415
        %v1557 = vpack.c.b16 %v1419, %v1416
        %v1558 = vpack.c.b16 %v1423, %v1420
        %v1559 = vpack.c.b16 %v1424, %v1421
        %v1560 = vpack.c.b16 %v1425, %v1422
        %v1561 = vpack.c.b16 %v1429, %v1426
        %v1562 = vpack.c.b16 %v1430, %v1427
        %v1563 = vpack.c.b16 %v1431, %v1428
        %v1564 = vpack.c.b16 %v1435, %v1432
        %v1565 = vpack.c.b16 %v1436, %v1433
        %v1566 = vpack.c.b16 %v1437, %v1434
        %v1567 = vpack.c.b16 %v1441, %v1438
        %v1568 = vpack.c.b16 %v1442, %v1439
        %v1569 = vpack.c.b16 %v1443, %v1440
        %v1570 = vpack.c.b16 %v1447, %v1444
        %v1571 = vpack.c.b16 %v1448, %v1445
        %v1572 = vpack.c.b16 %v1449, %v1446
        %v1573 = vpack.c.b16 %v1453, %v1450
        %v1574 = vpack.c.b16 %v1454, %v1451
        %v1575 = vpack.c.b16 %v1455, %v1452
        %v1576 = vpack.c.b16 %v1459, %v1456
        %v1577 = vpack.c.b16 %v1460, %v1457
        %v1578 = vpack.c.b16 %v1461, %v1458
        %v1579 = vpack.c.b16 %v1465, %v1462
        %v1580 = vpack.c.b16 %v1466, %v1463
        %v1581 = vpack.c.b16 %v1467, %v1464
        %v1582 = vpack.c.b16 %v1471, %v1468
        %v1583 = vpack.c.b16 %v1472, %v1469
        %v1584 = vpack.c.b16 %v1473, %v1470
        %v1585 = vpack.c.b16 %v1477, %v1474
        %v1586 = vpack.c.b16 %v1478, %v1475
        %v1587 = vpack.c.b16 %v1479, %v1476
        %v1588 = vpack.c.b16 %v1483, %v1480
        %v1589 = vpack.c.b16 %v1484, %v1481
        %v1590 = vpack.c.b16 %v1485, %v1482
        %v1591 = vpack.c.b16 %v1489, %v1486
        %v1592 = vpack.c.b16 %v1490, %v1487
        %v1593 = vpack.c.b16 %v1491, %v1488
        %v1594 = vpack.c.b16 %v1495, %v1492
        %v1595 = vpack.c.b16 %v1496, %v1493
        %v1596 = vpack.c.b16 %v1497, %v1494
        %v1597 = vpack.c.b16 %v1501, %v1498
        %v1598 = vpack.c.b16 %v1502, %v1499
        %v1599 = vpack.c.b16 %v1503, %v1500
        %1696 = vmatprep.subr.bf16.mxu0 %v1505
        %1697 = vmatpush1.bf16.msra.mxu0 %v1504
        %1698 = vmatprep.subr.bf16.mxu0 %v1508
        %1699 = vmatpush1.bf16.msra.mxu0 %v1507
        %1700 = vmatprep.subr.bf16.mxu0 %v1511
        %1701 = vmatpush1.bf16.msra.mxu0 %v1510
        %1702 = vmatprep.subr.bf16.mxu0 %v1514
        %1703 = vmatpush1.bf16.msra.mxu0 %v1513
        %1704 = vmatprep.subr.bf16.mxu0 %v1517
        %1705 = vmatpush1.bf16.msra.mxu0 %v1516
        %1706 = vmatprep.subr.bf16.mxu0 %v1520
        %1707 = vmatpush1.bf16.msra.mxu0 %v1519
        %1708 = vmatprep.subr.bf16.mxu0 %v1523
        %1709 = vmatpush1.bf16.msra.mxu0 %v1522
        %1710 = vmatprep.subr.bf16.mxu0 %v1526
        %1711 = vmatpush1.bf16.msra.mxu0 %v1525
        %1712 = vmatprep.subr.bf16.mxu0 %v1529
        %1713 = vmatpush1.bf16.msra.mxu0 %v1528
        %1714 = vmatprep.subr.bf16.mxu0 %v1532
        %1715 = vmatpush1.bf16.msra.mxu0 %v1531
        %1716 = vmatprep.subr.bf16.mxu0 %v1535
        %1717 = vmatpush1.bf16.msra.mxu0 %v1534
        %1718 = vmatprep.subr.bf16.mxu0 %v1538
        %1719 = vmatpush1.bf16.msra.mxu0 %v1537
        %1720 = vmatprep.subr.bf16.mxu0 %v1541
        %1721 = vmatpush1.bf16.msra.mxu0 %v1540
        %1722 = vmatprep.subr.bf16.mxu0 %v1544
        %1723 = vmatpush1.bf16.msra.mxu0 %v1543
        %1724 = vmatprep.subr.bf16.mxu0 %v1547
        %1725 = vmatpush1.bf16.msra.mxu0 %v1546
        %1726 = vmatprep.subr.bf16.mxu0 %v1550
        %1727 = vmatpush1.bf16.msra.mxu0 %v1549
        %1728 = vmatprep.mubr.bf16.mxu0 %v1005
        %1729 = vmatmul.mubr.bf16.gmra.mrb[0].mxu0 %v1004
        %v1730 = vpop.f32.mrb[0].mxu0
        %v1731 = vadd.f32 0.0, %v1730
        %v1732 = vpop.f32.mrb[0].mxu0
        %v1733 = vadd.f32 0.0, %v1732
        %v1734 = vpop.f32.mrb[0].mxu0
        %v1735 = vadd.f32 0.0, %v1734
        %v1736 = vpop.f32.mrb[0].mxu0
        %v1737 = vadd.f32 0.0, %v1736
        %1738 = vmatprep.mubr.bf16.mxu0 %v1009
        %1739 = vmatmul.mubr.bf16.gmra.mrb[0].mxu0 %v1008
        %v1740 = vpop.f32.mrb[0].mxu0
        %v1741 = vadd.f32 0.0, %v1740
        %v1742 = vpop.f32.mrb[0].mxu0
        %v1743 = vadd.f32 0.0, %v1742
        %v1744 = vpop.f32.mrb[0].mxu0
        %v1745 = vadd.f32 0.0, %v1744
        %v1746 = vpop.f32.mrb[0].mxu0
        %v1747 = vadd.f32 0.0, %v1746
        %1748 = vmatprep.mubr.bf16.mxu0 %v1013
        %1749 = vmatmul.mubr.bf16.gmra.mrb[0].mxu0 %v1012
        %v1750 = vpop.f32.mrb[0].mxu0
        %v1751 = vadd.f32 0.0, %v1750
        %v1752 = vpop.f32.mrb[0].mxu0
        %v1753 = vadd.f32 0.0, %v1752
        %v1754 = vpop.f32.mrb[0].mxu0
        %v1755 = vadd.f32 0.0, %v1754
        %v1756 = vpop.f32.mrb[0].mxu0
        %v1757 = vadd.f32 0.0, %v1756
        %1758 = vmatprep.mubr.bf16.mxu0 %v1017
        %1759 = vmatmul.mubr.bf16.gmra.mrb[0].mxu0 %v1016
        %v1760 = vpop.f32.mrb[0].mxu0
        %v1761 = vadd.f32 0.0, %v1760
        %v1762 = vpop.f32.mrb[0].mxu0
        %v1763 = vadd.f32 0.0, %v1762
        %v1764 = vpop.f32.mrb[0].mxu0
        %v1765 = vadd.f32 0.0, %v1764
        %v1766 = vpop.f32.mrb[0].mxu0
        %v1767 = vadd.f32 0.0, %v1766
        %1768 = vmatprep.mubr.bf16.mxu0 %v1021
        %1769 = vmatmul.mubr.bf16.gmra.mrb[0].mxu0 %v1020
        %v1770 = vpop.f32.mrb[0].mxu0
        %v1771 = vadd.f32 0.0, %v1770
        %v1772 = vpop.f32.mrb[0].mxu0
        %v1773 = vadd.f32 0.0, %v1772
        %v1774 = vpop.f32.mrb[0].mxu0
        %v1775 = vadd.f32 0.0, %v1774
        %v1776 = vpop.f32.mrb[0].mxu0
        %v1777 = vadd.f32 0.0, %v1776
        %1778 = vmatprep.mubr.bf16.mxu0 %v1025
        %1779 = vmatmul.mubr.bf16.gmra.mrb[0].mxu0 %v1024
        %v1780 = vpop.f32.mrb[0].mxu0
        %v1781 = vadd.f32 0.0, %v1780
        %v1782 = vpop.f32.mrb[0].mxu0
        %v1783 = vadd.f32 0.0, %v1782
        %v1784 = vpop.f32.mrb[0].mxu0
        %v1785 = vadd.f32 0.0, %v1784
        %v1786 = vpop.f32.mrb[0].mxu0
        %v1787 = vadd.f32 0.0, %v1786
        %1788 = vmatprep.mubr.bf16.mxu0 %v1029
        %1789 = vmatmul.mubr.bf16.gmra.mrb[0].mxu0 %v1028
        %v1790 = vpop.f32.mrb[0].mxu0
        %v1791 = vadd.f32 0.0, %v1790
        %v1792 = vpop.f32.mrb[0].mxu0
        %v1793 = vadd.f32 0.0, %v1792
        %v1794 = vpop.f32.mrb[0].mxu0
        %v1795 = vadd.f32 0.0, %v1794
        %v1796 = vpop.f32.mrb[0].mxu0
        %v1797 = vadd.f32 0.0, %v1796
        %1798 = vmatprep.mubr.bf16.mxu0 %v1033
        %1799 = vmatmul.mubr.bf16.gmra.mrb[0].mxu0 %v1032
        %v1800 = vpop.f32.mrb[0].mxu0
        %v1801 = vadd.f32 0.0, %v1800
        %v1802 = vpop.f32.mrb[0].mxu0
        %v1803 = vadd.f32 0.0, %v1802
        %v1804 = vpop.f32.mrb[0].mxu0
        %v1805 = vadd.f32 0.0, %v1804
        %v1806 = vpop.f32.mrb[0].mxu0
        %v1807 = vadd.f32 0.0, %v1806
        %1808 = vmatprep.mubr.bf16.mxu0 %v1037
        %1809 = vmatmul.mubr.bf16.gmra.mrb[0].mxu0 %v1036
        %v1810 = vpop.f32.mrb[0].mxu0
        %v1811 = vadd.f32 0.0, %v1810
        %v1812 = vpop.f32.mrb[0].mxu0
        %v1813 = vadd.f32 0.0, %v1812
        %v1814 = vpop.f32.mrb[0].mxu0
        %v1815 = vadd.f32 0.0, %v1814
        %v1816 = vpop.f32.mrb[0].mxu0
        %v1817 = vadd.f32 0.0, %v1816
        %1818 = vmatprep.mubr.bf16.mxu0 %v1041
        %1819 = vmatmul.mubr.bf16.gmra.mrb[0].mxu0 %v1040
        %v1820 = vpop.f32.mrb[0].mxu0
        %v1821 = vadd.f32 0.0, %v1820
        %v1822 = vpop.f32.mrb[0].mxu0
        %v1823 = vadd.f32 0.0, %v1822
        %v1824 = vpop.f32.mrb[0].mxu0
        %v1825 = vadd.f32 0.0, %v1824
        %v1826 = vpop.f32.mrb[0].mxu0
        %v1827 = vadd.f32 0.0, %v1826
        %1828 = vmatprep.mubr.bf16.mxu0 %v1045
        %1829 = vmatmul.mubr.bf16.gmra.mrb[0].mxu0 %v1044
        %v1830 = vpop.f32.mrb[0].mxu0
        %v1831 = vadd.f32 0.0, %v1830
        %v1832 = vpop.f32.mrb[0].mxu0
        %v1833 = vadd.f32 0.0, %v1832
        %v1834 = vpop.f32.mrb[0].mxu0
        %v1835 = vadd.f32 0.0, %v1834
        %v1836 = vpop.f32.mrb[0].mxu0
        %v1837 = vadd.f32 0.0, %v1836
        %1838 = vmatprep.mubr.bf16.mxu0 %v1049
        %1839 = vmatmul.mubr.bf16.gmra.mrb[0].mxu0 %v1048
        %v1840 = vpop.f32.mrb[0].mxu0
        %v1841 = vadd.f32 0.0, %v1840
        %v1842 = vpop.f32.mrb[0].mxu0
        %v1843 = vadd.f32 0.0, %v1842
        %v1844 = vpop.f32.mrb[0].mxu0
        %v1845 = vadd.f32 0.0, %v1844
        %v1846 = vpop.f32.mrb[0].mxu0
        %v1847 = vadd.f32 0.0, %v1846
        %1848 = vmatprep.mubr.bf16.mxu0 %v1053
        %1849 = vmatmul.mubr.bf16.gmra.mrb[0].mxu0 %v1052
        %v1850 = vpop.f32.mrb[0].mxu0
        %v1851 = vadd.f32 0.0, %v1850
        %v1852 = vpop.f32.mrb[0].mxu0
        %v1853 = vadd.f32 0.0, %v1852
        %v1854 = vpop.f32.mrb[0].mxu0
        %v1855 = vpop.f32.mrb[0].mxu0
        %1856 = vdwg.mxu0
        %1857 = vmatprep.subr.bf16.mxu0 %v1553
        %1858 = vmatpush1.bf16.msra.mxu0 %v1552
        %1859 = vmatprep.subr.bf16.mxu0 %v1556
        %1860 = vmatpush1.bf16.msra.mxu0 %v1555
        %1861 = vmatprep.subr.bf16.mxu0 %v1559
        %1862 = vmatpush1.bf16.msra.mxu0 %v1558
        %1863 = vmatprep.subr.bf16.mxu0 %v1562
        %1864 = vmatpush1.bf16.msra.mxu0 %v1561
        %1865 = vmatprep.subr.bf16.mxu0 %v1565
        %1866 = vmatpush1.bf16.msra.mxu0 %v1564
        %1867 = vmatprep.subr.bf16.mxu0 %v1568
        %1868 = vmatpush1.bf16.msra.mxu0 %v1567
        %1869 = vmatprep.subr.bf16.mxu0 %v1571
        %1870 = vmatpush1.bf16.msra.mxu0 %v1570
        %1871 = vmatprep.subr.bf16.mxu0 %v1574
        %1872 = vmatpush1.bf16.msra.mxu0 %v1573
        %1873 = vmatprep.subr.bf16.mxu0 %v1577
        %1874 = vmatpush1.bf16.msra.mxu0 %v1576
        %1875 = vmatprep.subr.bf16.mxu0 %v1580
        %1876 = vmatpush1.bf16.msra.mxu0 %v1579
        %1877 = vmatprep.subr.bf16.mxu0 %v1583
        %1878 = vmatpush1.bf16.msra.mxu0 %v1582
        %1879 = vmatprep.subr.bf16.mxu0 %v1586
        %1880 = vmatpush1.bf16.msra.mxu0 %v1585
        %1881 = vmatprep.subr.bf16.mxu0 %v1589
        %1882 = vmatpush1.bf16.msra.mxu0 %v1588
        %1883 = vmatprep.subr.bf16.mxu0 %v1592
        %1884 = vmatpush1.bf16.msra.mxu0 %v1591
        %1885 = vmatprep.subr.bf16.mxu0 %v1595
        %1886 = vmatpush1.bf16.msra.mxu0 %v1594
        %1887 = vmatprep.subr.bf16.mxu0 %v1598
        %1888 = vmatpush1.bf16.msra.mxu0 %v1597
        %1889 = vmatprep.mubr.bf16.mxu0 %v1007
        %1890 = vmatmul.mubr.bf16.gmra.mrb[0].mxu0 %v1006
        %v1891 = vpop.f32.mrb[0].mxu0
        %v1892 = vadd.f32 %v1731, %v1891
        %v1893 = vpop.f32.mrb[0].mxu0
        %v1894 = vadd.f32 %v1733, %v1893
        %v1895 = vpop.f32.mrb[0].mxu0
        %v1896 = vadd.f32 %v1735, %v1895
        %v1897 = vpop.f32.mrb[0].mxu0
        %v1898 = vadd.f32 %v1737, %v1897
        %1899 = vmatprep.mubr.bf16.mxu0 %v1011
        %1900 = vmatmul.mubr.bf16.gmra.mrb[0].mxu0 %v1010
        %v1901 = vpop.f32.mrb[0].mxu0
        %v1902 = vadd.f32 %v1741, %v1901
        %v1903 = vpop.f32.mrb[0].mxu0
        %v1904 = vadd.f32 %v1743, %v1903
        %v1905 = vpop.f32.mrb[0].mxu0
        %v1906 = vadd.f32 %v1745, %v1905
        %v1907 = vpop.f32.mrb[0].mxu0
        %v1908 = vadd.f32 %v1747, %v1907
        %1909 = vmatprep.mubr.bf16.mxu0 %v1015
        %1910 = vmatmul.mubr.bf16.gmra.mrb[0].mxu0 %v1014
        %v1911 = vpop.f32.mrb[0].mxu0
        %v1912 = vadd.f32 %v1751, %v1911
        %v1913 = vpop.f32.mrb[0].mxu0
        %v1914 = vadd.f32 %v1753, %v1913
        %v1915 = vpop.f32.mrb[0].mxu0
        %v1916 = vadd.f32 %v1755, %v1915
        %v1917 = vpop.f32.mrb[0].mxu0
        %v1918 = vadd.f32 %v1757, %v1917
        %1919 = vmatprep.mubr.bf16.mxu0 %v1019
        %1920 = vmatmul.mubr.bf16.gmra.mrb[0].mxu0 %v1018
        %v1921 = vpop.f32.mrb[0].mxu0
        %v1922 = vadd.f32 %v1761, %v1921
        %v1923 = vpop.f32.mrb[0].mxu0
        %v1924 = vadd.f32 %v1763, %v1923
        %v1925 = vpop.f32.mrb[0].mxu0
        %v1926 = vadd.f32 %v1765, %v1925
        %v1927 = vpop.f32.mrb[0].mxu0
        %v1928 = vadd.f32 %v1767, %v1927
        %1929 = vmatprep.mubr.bf16.mxu0 %v1023
        %1930 = vmatmul.mubr.bf16.gmra.mrb[0].mxu0 %v1022
        %v1931 = vpop.f32.mrb[0].mxu0
        %v1932 = vadd.f32 %v1771, %v1931
        %v1933 = vpop.f32.mrb[0].mxu0
        %v1934 = vadd.f32 %v1773, %v1933
        %v1935 = vpop.f32.mrb[0].mxu0
        %v1936 = vadd.f32 %v1775, %v1935
        %v1937 = vpop.f32.mrb[0].mxu0
        %v1938 = vadd.f32 %v1777, %v1937
        %1939 = vmatprep.mubr.bf16.mxu0 %v1027
        %1940 = vmatmul.mubr.bf16.gmra.mrb[0].mxu0 %v1026
        %v1941 = vpop.f32.mrb[0].mxu0
        %v1942 = vadd.f32 %v1781, %v1941
        %v1943 = vpop.f32.mrb[0].mxu0
        %v1944 = vadd.f32 %v1783, %v1943
        %v1945 = vpop.f32.mrb[0].mxu0
        %v1946 = vadd.f32 %v1785, %v1945
        %v1947 = vpop.f32.mrb[0].mxu0
        %v1948 = vadd.f32 %v1787, %v1947
        %1949 = vmatprep.mubr.bf16.mxu0 %v1031
        %1950 = vmatmul.mubr.bf16.gmra.mrb[0].mxu0 %v1030
        %v1951 = vpop.f32.mrb[0].mxu0
        %v1952 = vadd.f32 %v1791, %v1951
        %v1953 = vpop.f32.mrb[0].mxu0
        %v1954 = vadd.f32 %v1793, %v1953
        %v1955 = vpop.f32.mrb[0].mxu0
        %v1956 = vadd.f32 %v1795, %v1955
        %v1957 = vpop.f32.mrb[0].mxu0
        %v1958 = vadd.f32 %v1797, %v1957
        %1959 = vmatprep.mubr.bf16.mxu0 %v1035
        %1960 = vmatmul.mubr.bf16.gmra.mrb[0].mxu0 %v1034
        %v1961 = vpop.f32.mrb[0].mxu0
        %v1962 = vadd.f32 %v1801, %v1961
        %v1963 = vpop.f32.mrb[0].mxu0
        %v1964 = vadd.f32 %v1803, %v1963
        %v1965 = vpop.f32.mrb[0].mxu0
        %v1966 = vadd.f32 %v1805, %v1965
        %v1967 = vpop.f32.mrb[0].mxu0
        %v1968 = vadd.f32 %v1807, %v1967
        %1969 = vmatprep.mubr.bf16.mxu0 %v1039
        %1970 = vmatmul.mubr.bf16.gmra.mrb[0].mxu0 %v1038
        %v1971 = vpop.f32.mrb[0].mxu0
        %v1972 = vadd.f32 %v1811, %v1971
        %v1973 = vpop.f32.mrb[0].mxu0
        %v1974 = vadd.f32 %v1813, %v1973
        %v1975 = vpop.f32.mrb[0].mxu0
        %v1976 = vadd.f32 %v1815, %v1975
        %v1977 = vpop.f32.mrb[0].mxu0
        %v1978 = vadd.f32 %v1817, %v1977
        %1979 = vmatprep.mubr.bf16.mxu0 %v1043
        %1980 = vmatmul.mubr.bf16.gmra.mrb[0].mxu0 %v1042
        %v1981 = vpop.f32.mrb[0].mxu0
        %v1982 = vadd.f32 %v1821, %v1981
        %v1983 = vpop.f32.mrb[0].mxu0
        %v1984 = vadd.f32 %v1823, %v1983
        %v1985 = vpop.f32.mrb[0].mxu0
        %v1986 = vadd.f32 %v1825, %v1985
        %v1987 = vpop.f32.mrb[0].mxu0
        %v1988 = vadd.f32 %v1827, %v1987
        %1989 = vmatprep.mubr.bf16.mxu0 %v1047
        %1990 = vmatmul.mubr.bf16.gmra.mrb[0].mxu0 %v1046
        %v1991 = vpop.f32.mrb[0].mxu0
        %v1992 = vadd.f32 %v1831, %v1991
        %v1993 = vpop.f32.mrb[0].mxu0
        %v1994 = vadd.f32 %v1833, %v1993
        %v1995 = vpop.f32.mrb[0].mxu0
        %v1996 = vadd.f32 %v1835, %v1995
        %v1997 = vpop.f32.mrb[0].mxu0
        %v1998 = vadd.f32 %v1837, %v1997
        %1999 = vmatprep.mubr.bf16.mxu0 %v1051
        %2000 = vmatmul.mubr.bf16.gmra.mrb[0].mxu0 %v1050
        %v2001 = vpop.f32.mrb[0].mxu0
        %v2002 = vadd.f32 %v1841, %v2001
        %v2003 = vpop.f32.mrb[0].mxu0
        %v2004 = vadd.f32 %v1843, %v2003
        %v2005 = vpop.f32.mrb[0].mxu0
        %v2006 = vadd.f32 %v1845, %v2005
        %v2007 = vpop.f32.mrb[0].mxu0
        %v2008 = vadd.f32 %v1847, %v2007
        %2009 = vmatprep.mubr.bf16.mxu0 %v1055
        %2010 = vmatmul.mubr.bf16.gmra.mrb[0].mxu0 %v1054
        %v2011 = vpop.f32.mrb[0].mxu0
        %v2012 = vadd.f32 %v1851, %v2011
        %v2013 = vpop.f32.mrb[0].mxu0
        %v2014 = vadd.f32 %v1853, %v2013
        %v2015 = vpop.f32.mrb[0].mxu0
        %v2016 = vpop.f32.mrb[0].mxu0
        %2017 = vdwg.mxu0
        %2018 = vmatprep.subr.bf16.mxu0 0
        %2019 = vmatpush1.bf16.msra.mxu0 %v1506
        %2020 = vmatprep.subr.bf16.mxu0 0
        %2021 = vmatpush1.bf16.msra.mxu0 %v1509
        %2022 = vmatprep.subr.bf16.mxu0 0
        %2023 = vmatpush1.bf16.msra.mxu0 %v1512
        %2024 = vmatprep.subr.bf16.mxu0 0
        %2025 = vmatpush1.bf16.msra.mxu0 %v1515
        %2026 = vmatprep.subr.bf16.mxu0 0
        %2027 = vmatpush1.bf16.msra.mxu0 %v1518
        %2028 = vmatprep.subr.bf16.mxu0 0
        %2029 = vmatpush1.bf16.msra.mxu0 %v1521
        %2030 = vmatprep.subr.bf16.mxu0 0
        %2031 = vmatpush1.bf16.msra.mxu0 %v1524
        %2032 = vmatprep.subr.bf16.mxu0 0
        %2033 = vmatpush1.bf16.msra.mxu0 %v1527
        %2034 = vmatprep.subr.bf16.mxu0 0
        %2035 = vmatpush1.bf16.msra.mxu0 %v1530
        %2036 = vmatprep.subr.bf16.mxu0 0
        %2037 = vmatpush1.bf16.msra.mxu0 %v1533
        %2038 = vmatprep.subr.bf16.mxu0 0
        %2039 = vmatpush1.bf16.msra.mxu0 %v1536
        %2040 = vmatprep.subr.bf16.mxu0 0
        %2041 = vmatpush1.bf16.msra.mxu0 %v1539
        %2042 = vmatprep.subr.bf16.mxu0 0
        %2043 = vmatpush1.bf16.msra.mxu0 %v1542
        %2044 = vmatprep.subr.bf16.mxu0 0
        %2045 = vmatpush1.bf16.msra.mxu0 %v1545
        %2046 = vmatprep.subr.bf16.mxu0 0
        %2047 = vmatpush1.bf16.msra.mxu0 %v1548
        %2048 = vmatprep.subr.bf16.mxu0 0
        %2049 = vmatpush1.bf16.msra.mxu0 %v1551
        %2050 = vmatprep.mubr.bf16.mxu0 %v1005
        %2051 = vmatmul.mubr.bf16.gmra.mrb[0].mxu0 %v1004
        %v2052 = vpop.f32.mrb[0].mxu0
        %v2053 = vadd.f32 0.0, %v2052
        %v2054 = vpop.f32.mrb[0].mxu0
        %v2055 = vpop.f32.mrb[0].mxu0
        %v2056 = vadd.f32 0.0, %v2055
        %v2057 = vpop.f32.mrb[0].mxu0
        %2058 = vmatprep.mubr.bf16.mxu0 %v1009
        %2059 = vmatmul.mubr.bf16.gmra.mrb[0].mxu0 %v1008
        %v2060 = vpop.f32.mrb[0].mxu0
        %v2061 = vadd.f32 0.0, %v2060
        %v2062 = vpop.f32.mrb[0].mxu0
        %v2063 = vpop.f32.mrb[0].mxu0
        %v2064 = vadd.f32 0.0, %v2063
        %v2065 = vpop.f32.mrb[0].mxu0
        %2066 = vmatprep.mubr.bf16.mxu0 %v1013
        %2067 = vmatmul.mubr.bf16.gmra.mrb[0].mxu0 %v1012
        %v2068 = vpop.f32.mrb[0].mxu0
        %v2069 = vadd.f32 0.0, %v2068
        %v2070 = vpop.f32.mrb[0].mxu0
        %v2071 = vpop.f32.mrb[0].mxu0
        %v2072 = vadd.f32 0.0, %v2071
        %v2073 = vpop.f32.mrb[0].mxu0
        %2074 = vmatprep.mubr.bf16.mxu0 %v1017
        %2075 = vmatmul.mubr.bf16.gmra.mrb[0].mxu0 %v1016
        %v2076 = vpop.f32.mrb[0].mxu0
        %v2077 = vadd.f32 0.0, %v2076
        %v2078 = vpop.f32.mrb[0].mxu0
        %v2079 = vpop.f32.mrb[0].mxu0
        %v2080 = vadd.f32 0.0, %v2079
        %v2081 = vpop.f32.mrb[0].mxu0
        %2082 = vmatprep.mubr.bf16.mxu0 %v1021
        %2083 = vmatmul.mubr.bf16.gmra.mrb[0].mxu0 %v1020
        %v2084 = vpop.f32.mrb[0].mxu0
        %v2085 = vadd.f32 0.0, %v2084
        %v2086 = vpop.f32.mrb[0].mxu0
        %v2087 = vpop.f32.mrb[0].mxu0
        %v2088 = vadd.f32 0.0, %v2087
        %v2089 = vpop.f32.mrb[0].mxu0
        %2090 = vmatprep.mubr.bf16.mxu0 %v1025
        %2091 = vmatmul.mubr.bf16.gmra.mrb[0].mxu0 %v1024
        %v2092 = vpop.f32.mrb[0].mxu0
        %v2093 = vadd.f32 0.0, %v2092
        %v2094 = vpop.f32.mrb[0].mxu0
        %v2095 = vpop.f32.mrb[0].mxu0
        %v2096 = vadd.f32 0.0, %v2095
        %v2097 = vpop.f32.mrb[0].mxu0
        %2098 = vmatprep.mubr.bf16.mxu0 %v1029
        %2099 = vmatmul.mubr.bf16.gmra.mrb[0].mxu0 %v1028
        %v2100 = vpop.f32.mrb[0].mxu0
        %v2101 = vadd.f32 0.0, %v2100
        %v2102 = vpop.f32.mrb[0].mxu0
        %v2103 = vpop.f32.mrb[0].mxu0
        %v2104 = vadd.f32 0.0, %v2103
        %v2105 = vpop.f32.mrb[0].mxu0
        %2106 = vmatprep.mubr.bf16.mxu0 %v1033
        %2107 = vmatmul.mubr.bf16.gmra.mrb[0].mxu0 %v1032
        %v2108 = vpop.f32.mrb[0].mxu0
        %v2109 = vadd.f32 0.0, %v2108
        %v2110 = vpop.f32.mrb[0].mxu0
        %v2111 = vpop.f32.mrb[0].mxu0
        %v2112 = vadd.f32 0.0, %v2111
        %v2113 = vpop.f32.mrb[0].mxu0
        %2114 = vmatprep.mubr.bf16.mxu0 %v1037
        %2115 = vmatmul.mubr.bf16.gmra.mrb[0].mxu0 %v1036
        %v2116 = vpop.f32.mrb[0].mxu0
        %v2117 = vadd.f32 0.0, %v2116
        %v2118 = vpop.f32.mrb[0].mxu0
        %v2119 = vpop.f32.mrb[0].mxu0
        %v2120 = vadd.f32 0.0, %v2119
        %v2121 = vpop.f32.mrb[0].mxu0
        %2122 = vmatprep.mubr.bf16.mxu0 %v1041
        %2123 = vmatmul.mubr.bf16.gmra.mrb[0].mxu0 %v1040
        %v2124 = vpop.f32.mrb[0].mxu0
        %v2125 = vadd.f32 0.0, %v2124
        %v2126 = vpop.f32.mrb[0].mxu0
        %v2127 = vpop.f32.mrb[0].mxu0
        %v2128 = vadd.f32 0.0, %v2127
        %v2129 = vpop.f32.mrb[0].mxu0
        %2130 = vmatprep.mubr.bf16.mxu0 %v1045
        %2131 = vmatmul.mubr.bf16.gmra.mrb[0].mxu0 %v1044
        %v2132 = vpop.f32.mrb[0].mxu0
        %v2133 = vadd.f32 0.0, %v2132
        %v2134 = vpop.f32.mrb[0].mxu0
        %v2135 = vpop.f32.mrb[0].mxu0
        %v2136 = vadd.f32 0.0, %v2135
        %v2137 = vpop.f32.mrb[0].mxu0
        %2138 = vmatprep.mubr.bf16.mxu0 %v1049
        %2139 = vmatmul.mubr.bf16.gmra.mrb[0].mxu0 %v1048
        %v2140 = vpop.f32.mrb[0].mxu0
        %v2141 = vadd.f32 0.0, %v2140
        %v2142 = vpop.f32.mrb[0].mxu0
        %v2143 = vpop.f32.mrb[0].mxu0
        %v2144 = vadd.f32 0.0, %v2143
        %v2145 = vpop.f32.mrb[0].mxu0
        %2146 = vmatprep.mubr.bf16.mxu0 %v1053
        %2147 = vmatmul.mubr.bf16.gmra.mrb[0].mxu0 %v1052
        %v2148 = vpop.f32.mrb[0].mxu0
        %v2149 = vadd.f32 0.0, %v2148
        %v2150 = vpop.f32.mrb[0].mxu0
        %v2151 = vpop.f32.mrb[0].mxu0
        %v2152 = vpop.f32.mrb[0].mxu0
        %2153 = vdwg.mxu0
        %2154 = vmatprep.subr.bf16.mxu0 0
        %2155 = vmatpush1.bf16.msra.mxu0 %v1554
        %2156 = vmatprep.subr.bf16.mxu0 0
        %2157 = vmatpush1.bf16.msra.mxu0 %v1557
        %2158 = vmatprep.subr.bf16.mxu0 0
        %2159 = vmatpush1.bf16.msra.mxu0 %v1560
        %2160 = vmatprep.subr.bf16.mxu0 0
        %2161 = vmatpush1.bf16.msra.mxu0 %v1563
        %2162 = vmatprep.subr.bf16.mxu0 0
        %2163 = vmatpush1.bf16.msra.mxu0 %v1566
        %2164 = vmatprep.subr.bf16.mxu0 0
        %2165 = vmatpush1.bf16.msra.mxu0 %v1569
        %2166 = vmatprep.subr.bf16.mxu0 0
        %2167 = vmatpush1.bf16.msra.mxu0 %v1572
        %2168 = vmatprep.subr.bf16.mxu0 0
        %2169 = vmatpush1.bf16.msra.mxu0 %v1575
        %2170 = vmatprep.subr.bf16.mxu0 0
        %2171 = vmatpush1.bf16.msra.mxu0 %v1578
        %2172 = vmatprep.subr.bf16.mxu0 0
        %2173 = vmatpush1.bf16.msra.mxu0 %v1581
        %2174 = vmatprep.subr.bf16.mxu0 0
        %2175 = vmatpush1.bf16.msra.mxu0 %v1584
        %2176 = vmatprep.subr.bf16.mxu0 0
        %2177 = vmatpush1.bf16.msra.mxu0 %v1587
        %2178 = vmatprep.subr.bf16.mxu0 0
        %2179 = vmatpush1.bf16.msra.mxu0 %v1590
        %2180 = vmatprep.subr.bf16.mxu0 0
        %2181 = vmatpush1.bf16.msra.mxu0 %v1593
        %2182 = vmatprep.subr.bf16.mxu0 0
        %2183 = vmatpush1.bf16.msra.mxu0 %v1596
        %2184 = vmatprep.subr.bf16.mxu0 0
        %2185 = vmatpush1.bf16.msra.mxu0 %v1599
        %2186 = vmatprep.mubr.bf16.mxu0 %v1007
        %2187 = vmatmul.mubr.bf16.gmra.mrb[0].mxu0 %v1006
        %v2188 = vpop.f32.mrb[0].mxu0
        %v2189 = vadd.f32 %v2053, %v2188
        %v2190 = vpop.f32.mrb[0].mxu0
        %v2191 = vpop.f32.mrb[0].mxu0
        %v2192 = vadd.f32 %v2056, %v2191
        %v2193 = vpop.f32.mrb[0].mxu0
        %2194 = vmatprep.mubr.bf16.mxu0 %v1011
        %2195 = vmatmul.mubr.bf16.gmra.mrb[0].mxu0 %v1010
        %v2196 = vpop.f32.mrb[0].mxu0
        %v2197 = vadd.f32 %v2061, %v2196
        %v2198 = vpop.f32.mrb[0].mxu0
        %v2199 = vpop.f32.mrb[0].mxu0
        %v2200 = vadd.f32 %v2064, %v2199
        %v2201 = vpop.f32.mrb[0].mxu0
        %2202 = vmatprep.mubr.bf16.mxu0 %v1015
        %2203 = vmatmul.mubr.bf16.gmra.mrb[0].mxu0 %v1014
        %v2204 = vpop.f32.mrb[0].mxu0
        %v2205 = vadd.f32 %v2069, %v2204
        %v2206 = vpop.f32.mrb[0].mxu0
        %v2207 = vpop.f32.mrb[0].mxu0
        %v2208 = vadd.f32 %v2072, %v2207
        %v2209 = vpop.f32.mrb[0].mxu0
        %2210 = vmatprep.mubr.bf16.mxu0 %v1019
        %2211 = vmatmul.mubr.bf16.gmra.mrb[0].mxu0 %v1018
        %v2212 = vpop.f32.mrb[0].mxu0
        %v2213 = vadd.f32 %v2077, %v2212
        %v2214 = vpop.f32.mrb[0].mxu0
        %v2215 = vpop.f32.mrb[0].mxu0
        %v2216 = vadd.f32 %v2080, %v2215
        %v2217 = vpop.f32.mrb[0].mxu0
        %2218 = vmatprep.mubr.bf16.mxu0 %v1023
        %2219 = vmatmul.mubr.bf16.gmra.mrb[0].mxu0 %v1022
        %v2220 = vpop.f32.mrb[0].mxu0
        %v2221 = vadd.f32 %v2085, %v2220
        %v2222 = vpop.f32.mrb[0].mxu0
        %v2223 = vpop.f32.mrb[0].mxu0
        %v2224 = vadd.f32 %v2088, %v2223
        %v2225 = vpop.f32.mrb[0].mxu0
        %2226 = vmatprep.mubr.bf16.mxu0 %v1027
        %2227 = vmatmul.mubr.bf16.gmra.mrb[0].mxu0 %v1026
        %v2228 = vpop.f32.mrb[0].mxu0
        %v2229 = vadd.f32 %v2093, %v2228
        %v2230 = vpop.f32.mrb[0].mxu0
        %v2231 = vpop.f32.mrb[0].mxu0
        %v2232 = vadd.f32 %v2096, %v2231
        %v2233 = vpop.f32.mrb[0].mxu0
        %2234 = vmatprep.mubr.bf16.mxu0 %v1031
        %2235 = vmatmul.mubr.bf16.gmra.mrb[0].mxu0 %v1030
        %v2236 = vpop.f32.mrb[0].mxu0
        %v2237 = vadd.f32 %v2101, %v2236
        %v2238 = vpop.f32.mrb[0].mxu0
        %v2239 = vpop.f32.mrb[0].mxu0
        %v2240 = vadd.f32 %v2104, %v2239
        %v2241 = vpop.f32.mrb[0].mxu0
        %2242 = vmatprep.mubr.bf16.mxu0 %v1035
        %2243 = vmatmul.mubr.bf16.gmra.mrb[0].mxu0 %v1034
        %v2244 = vpop.f32.mrb[0].mxu0
        %v2245 = vadd.f32 %v2109, %v2244
        %v2246 = vpop.f32.mrb[0].mxu0
        %v2247 = vpop.f32.mrb[0].mxu0
        %v2248 = vadd.f32 %v2112, %v2247
        %v2249 = vpop.f32.mrb[0].mxu0
        %2250 = vmatprep.mubr.bf16.mxu0 %v1039
        %2251 = vmatmul.mubr.bf16.gmra.mrb[0].mxu0 %v1038
        %v2252 = vpop.f32.mrb[0].mxu0
        %v2253 = vadd.f32 %v2117, %v2252
        %v2254 = vpop.f32.mrb[0].mxu0
        %v2255 = vpop.f32.mrb[0].mxu0
        %v2256 = vadd.f32 %v2120, %v2255
        %v2257 = vpop.f32.mrb[0].mxu0
        %2258 = vmatprep.mubr.bf16.mxu0 %v1043
        %2259 = vmatmul.mubr.bf16.gmra.mrb[0].mxu0 %v1042
        %v2260 = vpop.f32.mrb[0].mxu0
        %v2261 = vadd.f32 %v2125, %v2260
        %v2262 = vpop.f32.mrb[0].mxu0
        %v2263 = vpop.f32.mrb[0].mxu0
        %v2264 = vadd.f32 %v2128, %v2263
        %v2265 = vpop.f32.mrb[0].mxu0
        %2266 = vmatprep.mubr.bf16.mxu0 %v1047
        %2267 = vmatmul.mubr.bf16.gmra.mrb[0].mxu0 %v1046
        %v2268 = vpop.f32.mrb[0].mxu0
        %v2269 = vadd.f32 %v2133, %v2268
        %v2270 = vpop.f32.mrb[0].mxu0
        %v2271 = vpop.f32.mrb[0].mxu0
        %v2272 = vadd.f32 %v2136, %v2271
        %v2273 = vpop.f32.mrb[0].mxu0
        %2274 = vmatprep.mubr.bf16.mxu0 %v1051
        %2275 = vmatmul.mubr.bf16.gmra.mrb[0].mxu0 %v1050
        %v2276 = vpop.f32.mrb[0].mxu0
        %v2277 = vadd.f32 %v2141, %v2276
        %v2278 = vpop.f32.mrb[0].mxu0
        %v2279 = vpop.f32.mrb[0].mxu0
        %v2280 = vadd.f32 %v2144, %v2279
        %v2281 = vpop.f32.mrb[0].mxu0
        %2282 = vmatprep.mubr.bf16.mxu0 %v1055
        %2283 = vmatmul.mubr.bf16.gmra.mrb[0].mxu0 %v1054
        %v2284 = vpop.f32.mrb[0].mxu0
        %v2285 = vadd.f32 %v2149, %v2284
        %v2286 = vpop.f32.mrb[0].mxu0
        %v2287 = vpop.f32.mrb[0].mxu0
        %v2288 = vpop.f32.mrb[0].mxu0
        %2289 = vdwg.mxu0
        %v2290 = vadd.f32 %v929, %v1892
        %v2291 = vadd.f32 %v930, %v1894
        %v2292 = vadd.f32 %v931, %v2189
        %v2293 = vadd.f32 %v932, %v1896
        %v2294 = vadd.f32 %v933, %v1898
        %v2295 = vadd.f32 %v934, %v2192
        %v2296 = vadd.f32 %v935, %v1902
        %v2297 = vadd.f32 %v936, %v1904
        %v2298 = vadd.f32 %v937, %v2197
        %v2299 = vadd.f32 %v938, %v1906
        %v2300 = vadd.f32 %v939, %v1908
        %v2301 = vadd.f32 %v940, %v2200
        %v2302 = vadd.f32 %v941, %v1912
        %v2303 = vadd.f32 %v942, %v1914
        %v2304 = vadd.f32 %v943, %v2205
        %v2305 = vadd.f32 %v944, %v1916
        %v2306 = vadd.f32 %v945, %v1918
        %v2307 = vadd.f32 %v946, %v2208
        %v2308 = vadd.f32 %v947, %v1922
        %v2309 = vadd.f32 %v948, %v1924
        %v2310 = vadd.f32 %v949, %v2213
        %v2311 = vadd.f32 %v950, %v1926
        %v2312 = vadd.f32 %v951, %v1928
        %v2313 = vadd.f32 %v952, %v2216
        %v2314 = vadd.f32 %v953, %v1932
        %v2315 = vadd.f32 %v954, %v1934
        %v2316 = vadd.f32 %v955, %v2221
        %v2317 = vadd.f32 %v956, %v1936
        %v2318 = vadd.f32 %v957, %v1938
        %v2319 = vadd.f32 %v958, %v2224
        %v2320 = vadd.f32 %v959, %v1942
        %v2321 = vadd.f32 %v960, %v1944
        %v2322 = vadd.f32 %v961, %v2229
        %v2323 = vadd.f32 %v962, %v1946
        %v2324 = vadd.f32 %v963, %v1948
        %v2325 = vadd.f32 %v964, %v2232
        %v2326 = vadd.f32 %v965, %v1952
        %v2327 = vadd.f32 %v966, %v1954
        %v2328 = vadd.f32 %v967, %v2237
        %v2329 = vadd.f32 %v968, %v1956
        %v2330 = vadd.f32 %v969, %v1958
        %v2331 = vadd.f32 %v970, %v2240
        %v2332 = vadd.f32 %v971, %v1962
        %v2333 = vadd.f32 %v972, %v1964
        %v2334 = vadd.f32 %v973, %v2245
        %v2335 = vadd.f32 %v974, %v1966
        %v2336 = vadd.f32 %v975, %v1968
        %v2337 = vadd.f32 %v976, %v2248
        %v2338 = vadd.f32 %v977, %v1972
        %v2339 = vadd.f32 %v978, %v1974
        %v2340 = vadd.f32 %v979, %v2253
        %v2341 = vadd.f32 %v980, %v1976
        %v2342 = vadd.f32 %v981, %v1978
        %v2343 = vadd.f32 %v982, %v2256
        %v2344 = vadd.f32 %v983, %v1982
        %v2345 = vadd.f32 %v984, %v1984
        %v2346 = vadd.f32 %v985, %v2261
        %v2347 = vadd.f32 %v986, %v1986
        %v2348 = vadd.f32 %v987, %v1988
        %v2349 = vadd.f32 %v988, %v2264
        %v2350 = vadd.f32 %v989, %v1992
        %v2351 = vadd.f32 %v990, %v1994
        %v2352 = vadd.f32 %v991, %v2269
        %v2353 = vadd.f32 %v992, %v1996
        %v2354 = vadd.f32 %v993, %v1998
        %v2355 = vadd.f32 %v994, %v2272
        %v2356 = vadd.f32 %v995, %v2002
        %v2357 = vadd.f32 %v996, %v2004
        %v2358 = vadd.f32 %v997, %v2277
        %v2359 = vadd.f32 %v998, %v2006
        %v2360 = vadd.f32 %v999, %v2008
        %v2361 = vadd.f32 %v1000, %v2280
        %v2362 = vadd.f32 %v1001, %v2012
        %v2363 = vadd.f32 %v1002, %v2014
        %v2364 = vadd.f32 %v1003, %v2285
        %2365 = vst [vmem:[#allocation8] sm:$0xff] %v2290
        %2366 = vst [vmem:[#allocation8 + $0x8] sm:$0xff] %v2291
        %2367 = vst [vmem:[#allocation8 + $0x10] sm:$0xff] %v2292
        %2368 = vst [vmem:[#allocation8 + $0x18] sm:$0xff] %v2293
        %2369 = vst [vmem:[#allocation8 + $0x20] sm:$0xff] %v2294
        %2370 = vst [vmem:[#allocation8 + $0x28] sm:$0xff] %v2295
        %2371 = vst [vmem:[#allocation8 + $0x30] sm:$0xff] %v2296
        %2372 = vst [vmem:[#allocation8 + $0x38] sm:$0xff] %v2297
        %2373 = vst [vmem:[#allocation8 + $0x40] sm:$0xff] %v2298
        %2374 = vst [vmem:[#allocation8 + $0x48] sm:$0xff] %v2299
        %2375 = vst [vmem:[#allocation8 + $0x50] sm:$0xff] %v2300
        %2376 = vst [vmem:[#allocation8 + $0x58] sm:$0xff] %v2301
        %2377 = vst [vmem:[#allocation8 + $0x60] sm:$0xff] %v2302
        %2378 = vst [vmem:[#allocation8 + $0x68] sm:$0xff] %v2303
        %2379 = vst [vmem:[#allocation8 + $0x70] sm:$0xff] %v2304
        %2380 = vst [vmem:[#allocation8 + $0x78] sm:$0xff] %v2305
        %2381 = vst [vmem:[#allocation8 + $0x80] sm:$0xff] %v2306
        %2382 = vst [vmem:[#allocation8 + $0x88] sm:$0xff] %v2307
        %2383 = vst [vmem:[#allocation8 + $0x90] sm:$0xff] %v2308
        %2384 = vst [vmem:[#allocation8 + $0x98] sm:$0xff] %v2309
        %2385 = vst [vmem:[#allocation8 + $0xa0] sm:$0xff] %v2310
        %2386 = vst [vmem:[#allocation8 + $0xa8] sm:$0xff] %v2311
        %2387 = vst [vmem:[#allocation8 + $0xb0] sm:$0xff] %v2312
        %2388 = vst [vmem:[#allocation8 + $0xb8] sm:$0xff] %v2313
        %2389 = vst [vmem:[#allocation8 + $0xc0] sm:$0xff] %v2314
        %2390 = vst [vmem:[#allocation8 + $0xc8] sm:$0xff] %v2315
        %2391 = vst [vmem:[#allocation8 + $0xd0] sm:$0xff] %v2316
        %2392 = vst [vmem:[#allocation8 + $0xd8] sm:$0xff] %v2317
        %2393 = vst [vmem:[#allocation8 + $0xe0] sm:$0xff] %v2318
        %2394 = vst [vmem:[#allocation8 + $0xe8] sm:$0xff] %v2319
        %2395 = vst [vmem:[#allocation8 + $0xf0] sm:$0xff] %v2320
        %2396 = vst [vmem:[#allocation8 + $0xf8] sm:$0xff] %v2321
        %2397 = vst [vmem:[#allocation8 + $0x100] sm:$0xff] %v2322
        %2398 = vst [vmem:[#allocation8 + $0x108] sm:$0xff] %v2323
        %2399 = vst [vmem:[#allocation8 + $0x110] sm:$0xff] %v2324
        %2400 = vst [vmem:[#allocation8 + $0x118] sm:$0xff] %v2325
        %2401 = vst [vmem:[#allocation8 + $0x120] sm:$0xff] %v2326
        %2402 = vst [vmem:[#allocation8 + $0x128] sm:$0xff] %v2327
        %2403 = vst [vmem:[#allocation8 + $0x130] sm:$0xff] %v2328
        %2404 = vst [vmem:[#allocation8 + $0x138] sm:$0xff] %v2329
        %2405 = vst [vmem:[#allocation8 + $0x140] sm:$0xff] %v2330
        %2406 = vst [vmem:[#allocation8 + $0x148] sm:$0xff] %v2331
        %2407 = vst [vmem:[#allocation8 + $0x150] sm:$0xff] %v2332
        %2408 = vst [vmem:[#allocation8 + $0x158] sm:$0xff] %v2333
        %2409 = vst [vmem:[#allocation8 + $0x160] sm:$0xff] %v2334
        %2410 = vst [vmem:[#allocation8 + $0x168] sm:$0xff] %v2335
        %2411 = vst [vmem:[#allocation8 + $0x170] sm:$0xff] %v2336
        %2412 = vst [vmem:[#allocation8 + $0x178] sm:$0xff] %v2337
        %2413 = vst [vmem:[#allocation8 + $0x180] sm:$0xff] %v2338
        %2414 = vst [vmem:[#allocation8 + $0x188] sm:$0xff] %v2339
        %2415 = vst [vmem:[#allocation8 + $0x190] sm:$0xff] %v2340
        %2416 = vst [vmem:[#allocation8 + $0x198] sm:$0xff] %v2341
        %2417 = vst [vmem:[#allocation8 + $0x1a0] sm:$0xff] %v2342
        %2418 = vst [vmem:[#allocation8 + $0x1a8] sm:$0xff] %v2343
        %2419 = vst [vmem:[#allocation8 + $0x1b0] sm:$0xff] %v2344
        %2420 = vst [vmem:[#allocation8 + $0x1b8] sm:$0xff] %v2345
        %2421 = vst [vmem:[#allocation8 + $0x1c0] sm:$0xff] %v2346
        %2422 = vst [vmem:[#allocation8 + $0x1c8] sm:$0xff] %v2347
        %2423 = vst [vmem:[#allocation8 + $0x1d0] sm:$0xff] %v2348
        %2424 = vst [vmem:[#allocation8 + $0x1d8] sm:$0xff] %v2349
        %2425 = vst [vmem:[#allocation8 + $0x1e0] sm:$0xff] %v2350
        %2426 = vst [vmem:[#allocation8 + $0x1e8] sm:$0xff] %v2351
        %2427 = vst [vmem:[#allocation8 + $0x1f0] sm:$0xff] %v2352
        %2428 = vst [vmem:[#allocation8 + $0x1f8] sm:$0xff] %v2353
        %2429 = vst [vmem:[#allocation8 + $0x200] sm:$0xff] %v2354
        %2430 = vst [vmem:[#allocation8 + $0x208] sm:$0xff] %v2355
        %2431 = vst [vmem:[#allocation8 + $0x210] sm:$0xff] %v2356
        %2432 = vst [vmem:[#allocation8 + $0x218] sm:$0xff] %v2357
        %2433 = vst [vmem:[#allocation8 + $0x220] sm:$0xff] %v2358
        %2434 = vst [vmem:[#allocation8 + $0x228] sm:$0xff] %v2359
        %2435 = vst [vmem:[#allocation8 + $0x230] sm:$0xff] %v2360
        %2436 = vst [vmem:[#allocation8 + $0x238] sm:$0xff] %v2361
        %2437 = vst [vmem:[#allocation8 + $0x240] sm:$0xf] %v2362
        %2438 = vst [vmem:[#allocation8 + $0x248] sm:$0xf] %v2363
        %2439 = vst [vmem:[#allocation8 + $0x250] sm:$0xf] %v2364
        // Predicated region
        $region49: #{tpu_custom_call.1} parent=31 // pred_check
          %p2440 = pneg %p107
        $region50: #{tpu_custom_call.1} parent=31 // pred_check_branch
          %2442 = sbr.rel (%p2440) target = $region52
        $region51: #{tpu_custom_call.1} parent=31 // pred_region
          %s2444 = ssub.s32 9600, 9600
          %2445 = vsyncadd [#allocation4], %s2444
          %s2446 = sshll.u32 [#allocation8], 4
          %s2447 = int_to_ptr.vmem [resolvable:$true] %s2446
          %2452 = dma.vmem_to_hbm [thread:$0]  %s2447, 9600, %s3, [#allocation4], 384, 384, 24
        $region52: #{tpu_custom_call.1} parent=31 // pred_fallthru
          _
        // Predicated region
        $region53: #{tpu_custom_call.1} parent=31 // pred_check
          %p2453 = pneg %p107
        $region54: #{tpu_custom_call.1} parent=31 // pred_check_branch
          %2455 = sbr.rel (%p2453) target = $region56
        $region55: #{tpu_custom_call.1} parent=31 // pred_region
          %2456 = dma.done [#allocation4], 9600
        $region56: #{tpu_custom_call.1} parent=31 // pred_fallthru
          _
      $region32: #{tpu_custom_call.1} parent=5 // pred_fallthru
        _
      %p2457 = scmp.le.s32.totalorder 2, %s16
      // Predicated region
      $region57: #{tpu_custom_call.1} parent=5 // pred_check
        %p2458 = pneg %p2457
      $region58: #{tpu_custom_call.1} parent=5 // pred_check_branch
        %2460 = sbr.rel (%p2458) target = $region60
      $region59: #{tpu_custom_call.1} parent=5 // pred_region
        %s2461 = ssub.s32 %s16, 2
      $region60: #{tpu_custom_call.1} parent=5 // pred_fallthru
        _
    $region6: #{tpu_custom_call.1} parent=1 // loop_footer
      %s20 = sadd.s32 1, %s16
    $region7: #{tpu_custom_call.1} parent=1 // loop_footer_branch
      %15 = sbr.rel target = $region3
    $region8: #{tpu_custom_call.1} parent=1 // loop_exit
      _
    %2462 = vsyncpa [#allocation3], 1
    %s2463 = scalar_lea.sflag [#allocation3], 1
    %2464 = vsyncpa %s2463, 1
    %2465 = vsyncpa [#allocation6], 1
    %s2466 = scalar_lea.sflag [#allocation6], 1
    %2467 = vsyncpa %s2466, 1
    %2468 = vsyncpa [#allocation4], 1
    %s2469 = scalar_lea.sflag [#allocation4], 1
    %2470 = vsyncpa %s2469, 1

</llo_original>
